<compile_context>
chip_gen: v6e
topology: v6e:2x2x1
jax: 0.10.0
libtpu: 0.0.40
codegen_flags: <defaults>
</compile_context>

<pallas_src>
import math
import jax
import jax.numpy as jnp
from jax.experimental import pallas as pl
from jax.experimental.pallas import tpu as pltpu

# ----------------------------------------------------------------------------
# Model configuration (small, but consistent with SADCL.__init__)
# ----------------------------------------------------------------------------
NUM_CLASS = 8            # num_class
HIDDEN_DIM = 32          # transformer.d_model
BACKBONE_CHANNELS = 8    # backbone.num_channels
PROJ_HEAD_DIM = 1024     # hard-coded self.proj_head_dim in SADCL
MINI_BATCH = 2           # batch_size / WORLD_SIZE


# ----------------------------------------------------------------------------
# Single fused Pallas kernel
# ----------------------------------------------------------------------------
def _sadcl_fused_kernel(x_ref, w_in_t_ref, posb_t_ref, q_ref, extra_ref,
                        w1_ref, b1_ref, w2_ref, b2_ref, fcw_ref, fcb_ref,
                        out_ref, hs_ref, vis_ref, mbp_ref, proto_ref):
    """Fused: (folded backbone-proj ∘ input_proj) -> batched cross-attention
    stand-in -> GroupWiseLinear head -> proj_head MLP on
    [hs | memorybank | prototype] rows -> final-shape outputs."""
    B, C, d = hs_ref.shape
    BHW = posb_t_ref.shape[1]
    HW = BHW // B
    scale = 1.0 / math.sqrt(d)

    # Folded (backbone channel proj ∘ input_proj 1x1 conv), lane-dense:
    # (d, Ci) @ (Ci, B*HW) -> memory kept transposed as (d, B*HW).
    # Bias + positional encoding are one pre-folded additive constant.
    mem_t = jnp.dot(w_in_t_ref[...], x_ref[...],
                    preferred_element_type=jnp.float32) + posb_t_ref[...]   # (d, B*HW)

    # One batched logits tile for all images: (C, d) @ (d, B*HW) -> (C, B*HW)
    logits = jnp.dot(q_ref[...], mem_t,
                     preferred_element_type=jnp.float32) * scale            # (C, B*HW)

    # Per-image segment softmax over the B column blocks (exact denominator).
    col = jax.lax.broadcasted_iota(jnp.int32, (C, BHW), 1)
    attn_parts = []
    for b in range(B):                       # B tiny & static -> fully unrolled
        seg = jnp.logical_and(col >= b * HW, col < (b + 1) * HW)
        lb = jnp.where(seg, logits, -jnp.inf)
        mx = jnp.max(lb, axis=-1, keepdims=True)
        pb = jnp.exp(lb - mx)                # exp(-inf) == 0 outside the segment
        attn_parts.append(pb / jnp.sum(pb, axis=-1, keepdims=True))
    attn = jnp.concatenate(attn_parts, axis=0)            # (B*C, B*HW) block-diag

    # Block-diagonal attention application: (B*C, B*HW) x (B*HW, d) -> (B*C, d)
    hs_rows = jax.lax.dot_general(attn, mem_t, (((1,), (1,)), ((), ())),
                                  preferred_element_type=jnp.float32)        # (B*C, d)
    hs_3d = hs_rows.reshape(B, C, d)
    hs_ref[...] = hs_3d.astype(hs_ref.dtype)               # write-only output

    # GroupWiseLinear fused here (no reload of hs_ref):
    # out[b, c] = sum_d W[c, d] * hs[b, c, d] + bias[c]
    out_ref[...] = (jnp.sum(fcw_ref[...][None, :, :] * hs_3d, axis=-1)
                    + fcb_ref[...]).astype(out_ref.dtype)

    # proj_head = relu(x @ w1 + b1) @ w2 + b2 over [hs | memorybank | prototype]
    # rows in one pass (no scratch round-trip).  w2 arrives in bf16 (halves the
    # dominant weight DMA) but is up-cast so the matmul keeps f32 activations.
    x_mlp = jnp.concatenate([hs_rows, extra_ref[...]], axis=0)   # ((2B+1)*C, d)
    h = jnp.maximum(
        jnp.dot(x_mlp, w1_ref[...], preferred_element_type=jnp.float32) + b1_ref[...],
        0.0)
    proj = jnp.dot(h, w2_ref[...].astype(jnp.float32),
                   preferred_element_type=jnp.float32) + b2_ref[...]         # ((2B+1)*C, P)

    BC = B * C
    vis_ref[...] = proj[:BC].reshape(B, C, -1).astype(vis_ref.dtype)
    mbp_ref[...] = proj[BC:2 * BC].reshape(B, C, -1).astype(mbp_ref.dtype)
    proto_ref[...] = proj[2 * BC:].reshape(1, C, -1).astype(proto_ref.dtype)


# ----------------------------------------------------------------------------
# Deterministic parameter init (no checkpoint / .npy loads)
# ----------------------------------------------------------------------------
def init_params(key):
    ks = jax.random.split(key, 9)
    stdv = 1.0 / math.sqrt(HIDDEN_DIM)
    inv_cb = 1.0 / math.sqrt(BACKBONE_CHANNELS)
    p = {
        # backbone stand-in: fixed projection image-channels -> backbone channels
        "backbone_proj": jax.random.normal(ks[0], (3, BACKBONE_CHANNELS), jnp.float32) * 0.1,
        # input_proj = Conv2d(backbone_channels, hidden_dim, kernel_size=1)
        "input_proj_w": jax.random.uniform(ks[1], (BACKBONE_CHANNELS, HIDDEN_DIM),
                                           jnp.float32, -inv_cb, inv_cb),
        "input_proj_b": jax.random.uniform(ks[2], (HIDDEN_DIM,), jnp.float32, -inv_cb, inv_cb),
        # query_embed = nn.Embedding(num_class, hidden_dim)
        "query_embed": jax.random.normal(ks[3], (NUM_CLASS, HIDDEN_DIM), jnp.float32),
        # fc = GroupWiseLinear(num_class, hidden_dim, bias=True)
        "fc_W": jax.random.uniform(ks[4], (NUM_CLASS, HIDDEN_DIM), jnp.float32, -stdv, stdv),
        "fc_b": jax.random.uniform(ks[5], (NUM_CLASS,), jnp.float32, -stdv, stdv),
        # prototype (np.load replaced by deterministic init), shape (1, C, D)
        "prototype": jax.random.normal(ks[6], (1, NUM_CLASS, HIDDEN_DIM), jnp.float32),
        # proj_head = MLP(hidden, hidden, 1024, num_layers=2)
        "ph_w1": jax.random.uniform(ks[7], (HIDDEN_DIM, HIDDEN_DIM), jnp.float32, -stdv, stdv),
        "ph_b1": jnp.zeros((HIDDEN_DIM,), jnp.float32),
        "ph_w2": jax.random.uniform(ks[8], (HIDDEN_DIM, PROJ_HEAD_DIM), jnp.float32, -stdv, stdv),
        "ph_b2": jnp.zeros((PROJ_HEAD_DIM,), jnp.float32),
    }
    # memorybank = prototype.repeat(mini_batch_size, 1, 1)
    p["memorybank"] = jnp.tile(p["prototype"], (MINI_BATCH, 1, 1))
    return p


def prepare_params(params, batch, height, width):
    """One-time constant prep, hoisted out of the per-call traced forward."""
    d, C, P = HIDDEN_DIM, NUM_CLASS, PROJ_HEAD_DIM
    H, W = height // 2, width // 2
    HW = H * W

    # Algebraic fold: backbone channel projection ∘ input_proj (both linear),
    # stored transposed (d, Ci) so the kernel matmul is (d,Ci)@(Ci,B*HW).
    w_in_t = (params["backbone_proj"] @ params["input_proj_w"]).T           # (d, Ci)

    # DETR-style sinusoidal positional-encoding stand-in (glue), folded with the
    # input_proj bias into ONE additive constant, tiled over B, transposed.
    yy = jnp.arange(H, dtype=jnp.float32)[:, None, None]
    xx = jnp.arange(W, dtype=jnp.float32)[None, :, None]
    k = jnp.arange(d // 2, dtype=jnp.float32)[None, None, :]
    freq = 1.0 / (100.0 ** (2.0 * k / d))
    pos = jnp.concatenate([jnp.sin(yy * freq) + 0.0 * xx,
                           jnp.cos(xx * freq) + 0.0 * yy], axis=-1).reshape(HW, d)
    pos_bias_t = (jnp.tile(pos, (batch, 1)) + params["input_proj_b"][None, :]).T  # (d, B*HW)

    # memorybank + prototype rows appended after hs rows -> one proj_head pass.
    extra = jnp.concatenate([params["memorybank"].reshape(batch * C, d),
                             params["prototype"].reshape(C, d)], axis=0)    # ((B+1)*C, d)

    return {
        "w_in_t": w_in_t,
        "pos_bias_t": pos_bias_t,
        "query": params["query_embed"],
        "extra": extra,
        "ph_w1": params["ph_w1"],
        "ph_b1": params["ph_b1"].reshape(1, d),
        "ph_w2": params["ph_w2"].astype(jnp.bfloat16),   # halve dominant weight DMA
        "ph_b2": params["ph_b2"].reshape(1, P),
        "fc_W": params["fc_W"],
        "fc_b": params["fc_b"].reshape(1, C),
    }


# ----------------------------------------------------------------------------
# SADCL.forward
# ----------------------------------------------------------------------------
def sadcl_forward(prep, image):
    B, Ci, H0, W0 = image.shape
    d, C, P = HIDDEN_DIM, NUM_CLASS, PROJ_HEAD_DIM
    H, W = H0 // 2, W0 // 2
    HW = H * W

    # TODO(synk): `backbone` and `transformer` are injected sub-modules in the
    # original SADCL (not defined in that file); replaced by a deterministic
    # 2x2 avg-pool + folded linear channel projection and a single
    # cross-attention decoder layer executed inside the fused kernel.
    pooled = image.reshape(B, Ci, H, 2, W, 2).mean(axis=(3, 5))            # (B,Ci,H,W)
    # Lane-dense pixel input: (Ci, B*HW) — one padded (8,128) tile vs 16 for
    # the row-major (B*HW, Ci) layout.
    x_t = jnp.transpose(pooled, (1, 0, 2, 3)).reshape(Ci, B * HW)

    full2 = lambda i: (0, 0)
    full3 = lambda i: (0, 0, 0)

    out, hs_last, vis_embed, memorybank_proj, prototype_proj = pl.pallas_call(
        _sadcl_fused_kernel,
        out_shape=(jax.ShapeDtypeStruct((B, C), jnp.float32),
                   jax.ShapeDtypeStruct((B, C, d), jnp.float32),
                   jax.ShapeDtypeStruct((B, C, P), jnp.float32),
                   jax.ShapeDtypeStruct((B, C, P), jnp.float32),
                   jax.ShapeDtypeStruct((1, C, P), jnp.float32)),
        grid=(1,),
        in_specs=[
            pl.BlockSpec((Ci, B * HW), full2),          # pixel rows, lane-dense
            pl.BlockSpec((d, Ci), full2),               # folded input_proj weight^T
            pl.BlockSpec((d, B * HW), full2),           # (pos + bias)^T constant
            pl.BlockSpec((C, d), full2),                # query_embed
            pl.BlockSpec(((B + 1) * C, d), full2),      # memorybank + prototype rows
            pl.BlockSpec((d, d), full2),                # proj_head w1
            pl.BlockSpec((1, d), full2),                # proj_head b1
            pl.BlockSpec((d, P), full2),                # proj_head w2 (bf16 storage)
            pl.BlockSpec((1, P), full2),                # proj_head b2
            pl.BlockSpec((C, d), full2),                # GroupWiseLinear W
            pl.BlockSpec((1, C), full2),                # GroupWiseLinear b
        ],
        out_specs=(
            pl.BlockSpec((B, C), full2),                # fc logits
            pl.BlockSpec((B, C, d), full3),             # hs[-1]
            pl.BlockSpec((B, C, P), full3),             # vis_embed (proj_head(hs))
            pl.BlockSpec((B, C, P), full3),             # proj_head(memorybank)
            pl.BlockSpec((1, C, P), full3),             # proj_head(prototype)
        ),
        compiler_params=pltpu.CompilerParams(dimension_semantics=("arbitrary",)),
        cost_estimate=pl.CostEstimate(flops=2_950_000, transcendentals=2_048,
                                      bytes_accessed=280_000),
    )(x_t, prep["w_in_t"], prep["pos_bias_t"], prep["query"], prep["extra"],
      prep["ph_w1"], prep["ph_b1"], prep["ph_w2"], prep["ph_b2"],
      prep["fc_W"], prep["fc_b"])

    # (out, hs[-1].clone().detach(), vis_embed, memorybank, prototype)
    return out, hs_last, vis_embed, memorybank_proj, prototype_proj


# ----------------------------------------------------------------------------
if __name__ == "__main__":
    key = jax.random.PRNGKey(0)
    kp, kx = jax.random.split(key)
    params = init_params(kp)
    image = jax.random.normal(kx, (MINI_BATCH, 3, 16, 16), jnp.float32)

    # One-time constant prep (hoisted per the perf review).
    prep = prepare_params(params, MINI_BATCH, 16, 16)
    prep = jax.tree_util.tree_map(jnp.asarray, prep)

    fwd = jax.jit(sadcl_forward)
    outs = fwd(prep, image)
    jax.block_until_ready(outs)

    out, hs_last, vis_embed, mb_proj, proto = outs
    assert out.shape == (MINI_BATCH, NUM_CLASS)
    assert hs_last.shape == (MINI_BATCH, NUM_CLASS, HIDDEN_DIM)
    assert vis_embed.shape == (MINI_BATCH, NUM_CLASS, PROJ_HEAD_DIM)
    assert mb_proj.shape == (MINI_BATCH, NUM_CLASS, PROJ_HEAD_DIM)
    assert proto.shape == (1, NUM_CLASS, PROJ_HEAD_DIM)
    assert jnp.all(jnp.isfinite(out)) and jnp.all(jnp.isfinite(hs_last))
    assert jnp.all(jnp.isfinite(vis_embed)) and jnp.all(jnp.isfinite(proto))
    print("KERNEL_OK")
</pallas_src>

<mosaic_0001>
module attributes {stable_mosaic.version = 11 : i64} {
  func.func @_sadcl_fused_kernel(%arg0: i32, %arg1: memref<3x128xf32, #tpu.memory_space<vmem>>, %arg2: memref<32x3xf32, #tpu.memory_space<vmem>>, %arg3: memref<32x128xf32, #tpu.memory_space<vmem>>, %arg4: memref<8x32xf32, #tpu.memory_space<vmem>>, %arg5: memref<24x32xf32, #tpu.memory_space<vmem>>, %arg6: memref<32x32xf32, #tpu.memory_space<vmem>>, %arg7: memref<1x32xf32, #tpu.memory_space<vmem>>, %arg8: memref<32x1024xbf16, #tpu.memory_space<vmem>>, %arg9: memref<1x1024xf32, #tpu.memory_space<vmem>>, %arg10: memref<8x32xf32, #tpu.memory_space<vmem>>, %arg11: memref<1x8xf32, #tpu.memory_space<vmem>>, %arg12: memref<2x8xf32, #tpu.memory_space<vmem>>, %arg13: memref<2x8x32xf32, #tpu.memory_space<vmem>>, %arg14: memref<2x8x1024xf32, #tpu.memory_space<vmem>>, %arg15: memref<2x8x1024xf32, #tpu.memory_space<vmem>>, %arg16: memref<1x8x1024xf32, #tpu.memory_space<vmem>>) attributes {dimension_semantics = [#tpu.dimension_semantics<arbitrary>], iteration_bounds = array<i64: 1>, scalar_prefetch = 0 : i64, scratch_operands = 0 : i64, tpu.core_type = #tpu.core_type<tc>, window_params = [{pipeline_mode = #tpu.pipeline_mode<synchronous>, transform_indices = @transform_0, window_bounds = array<i64: 3, 128>}, {pipeline_mode = #tpu.pipeline_mode<synchronous>, transform_indices = @transform_1, window_bounds = array<i64: 32, 3>}, {pipeline_mode = #tpu.pipeline_mode<synchronous>, transform_indices = @transform_2, window_bounds = array<i64: 32, 128>}, {pipeline_mode = #tpu.pipeline_mode<synchronous>, transform_indices = @transform_3, window_bounds = array<i64: 8, 32>}, {pipeline_mode = #tpu.pipeline_mode<synchronous>, transform_indices = @transform_4, window_bounds = array<i64: 24, 32>}, {pipeline_mode = #tpu.pipeline_mode<synchronous>, transform_indices = @transform_5, window_bounds = array<i64: 32, 32>}, {pipeline_mode = #tpu.pipeline_mode<synchronous>, transform_indices = @transform_6, window_bounds = array<i64: 1, 32>}, {pipeline_mode = #tpu.pipeline_mode<synchronous>, transform_indices = @transform_7, window_bounds = array<i64: 32, 1024>}, {pipeline_mode = #tpu.pipeline_mode<synchronous>, transform_indices = @transform_8, window_bounds = array<i64: 1, 1024>}, {pipeline_mode = #tpu.pipeline_mode<synchronous>, transform_indices = @transform_9, window_bounds = array<i64: 8, 32>}, {pipeline_mode = #tpu.pipeline_mode<synchronous>, transform_indices = @transform_10, window_bounds = array<i64: 1, 8>}, {pipeline_mode = #tpu.pipeline_mode<synchronous>, transform_indices = @transform_11, window_bounds = array<i64: 2, 8>}, {pipeline_mode = #tpu.pipeline_mode<synchronous>, transform_indices = @transform_12, window_bounds = array<i64: 2, 8, 32>}, {pipeline_mode = #tpu.pipeline_mode<synchronous>, transform_indices = @transform_13, window_bounds = array<i64: 2, 8, 1024>}, {pipeline_mode = #tpu.pipeline_mode<synchronous>, transform_indices = @transform_14, window_bounds = array<i64: 2, 8, 1024>}, {pipeline_mode = #tpu.pipeline_mode<synchronous>, transform_indices = @transform_15, window_bounds = array<i64: 1, 8, 1024>}]} {
    %c0 = arith.constant 0 : index
    %c0_0 = arith.constant 0 : index
    %0 = vector.load %arg2[%c0, %c0_0] : memref<32x3xf32, #tpu.memory_space<vmem>>, vector<32x3xf32>
    %c0_1 = arith.constant 0 : index
    %c0_2 = arith.constant 0 : index
    %1 = vector.load %arg1[%c0_1, %c0_2] : memref<3x128xf32, #tpu.memory_space<vmem>>, vector<3x128xf32>
    %cst = arith.constant dense<0.000000e+00> : vector<32x128xf32>
    %2 = tpu.matmul %0, %1, %cst {dimension_numbers = #tpu.dot_dimension_numbers<[1], [0], [0], [1], [0, 0, 1, 1], [], []>} : vector<32x3xf32>, vector<3x128xf32>, vector<32x128xf32> -> vector<32x128xf32>
    %c0_3 = arith.constant 0 : index
    %c0_4 = arith.constant 0 : index
    %3 = vector.load %arg3[%c0_3, %c0_4] : memref<32x128xf32, #tpu.memory_space<vmem>>, vector<32x128xf32>
    %4 = arith.addf %2, %3 : vector<32x128xf32>
    %c0_5 = arith.constant 0 : index
    %c0_6 = arith.constant 0 : index
    %5 = vector.load %arg4[%c0_5, %c0_6] : memref<8x32xf32, #tpu.memory_space<vmem>>, vector<8x32xf32>
    %cst_7 = arith.constant dense<0.000000e+00> : vector<8x128xf32>
    %6 = tpu.matmul %5, %4, %cst_7 {dimension_numbers = #tpu.dot_dimension_numbers<[1], [0], [0], [1], [0, 0, 1, 1], [], []>} : vector<8x32xf32>, vector<32x128xf32>, vector<8x128xf32> -> vector<8x128xf32>
    %cst_8 = arith.constant 0.176776692 : f32
    %7 = vector.broadcast %cst_8 : f32 to vector<8x128xf32>
    %8 = arith.mulf %6, %7 : vector<8x128xf32>
    %9 = tpu.iota {dimensions = array<i32: 1>} : vector<8x128xi32>
    %c0_i32 = arith.constant 0 : i32
    %10 = vector.broadcast %c0_i32 : i32 to vector<8x128xi32>
    %11 = arith.cmpi sge, %9, %10 : vector<8x128xi32>
    %c64_i32 = arith.constant 64 : i32
    %12 = vector.broadcast %c64_i32 : i32 to vector<8x128xi32>
    %13 = arith.cmpi slt, %9, %12 : vector<8x128xi32>
    %14 = arith.andi %11, %13 : vector<8x128xi1>
    %cst_9 = arith.constant 0xFF800000 : f32
    %15 = vector.broadcast %cst_9 : f32 to vector<8x128xf32>
    %16 = arith.select %14, %8, %15 : vector<8x128xi1>, vector<8x128xf32>
    %cst_10 = arith.constant dense<0xFF800000> : vector<8xf32>
    %17 = vector.multi_reduction <maximumf>, %16, %cst_10 [1] : vector<8x128xf32> to vector<8xf32>
    %18 = vector.shape_cast %17 : vector<8xf32> to vector<8x1xf32>
    %19 = vector.broadcast %18 : vector<8x1xf32> to vector<8x128xf32>
    %20 = arith.subf %16, %19 : vector<8x128xf32>
    %21 = math.exp %20 : vector<8x128xf32>
    %cst_11 = arith.constant dense<0.000000e+00> : vector<8xf32>
    %22 = vector.multi_reduction <add>, %21, %cst_11 [1] : vector<8x128xf32> to vector<8xf32>
    %23 = vector.shape_cast %22 : vector<8xf32> to vector<8x1xf32>
    %24 = vector.broadcast %23 : vector<8x1xf32> to vector<8x128xf32>
    %25 = arith.divf %21, %24 : vector<8x128xf32>
    %c64_i32_12 = arith.constant 64 : i32
    %26 = vector.broadcast %c64_i32_12 : i32 to vector<8x128xi32>
    %27 = arith.cmpi sge, %9, %26 : vector<8x128xi32>
    %c128_i32 = arith.constant 128 : i32
    %28 = vector.broadcast %c128_i32 : i32 to vector<8x128xi32>
    %29 = arith.cmpi slt, %9, %28 : vector<8x128xi32>
    %30 = arith.andi %27, %29 : vector<8x128xi1>
    %cst_13 = arith.constant 0xFF800000 : f32
    %31 = vector.broadcast %cst_13 : f32 to vector<8x128xf32>
    %32 = arith.select %30, %8, %31 : vector<8x128xi1>, vector<8x128xf32>
    %cst_14 = arith.constant dense<0xFF800000> : vector<8xf32>
    %33 = vector.multi_reduction <maximumf>, %32, %cst_14 [1] : vector<8x128xf32> to vector<8xf32>
    %34 = vector.shape_cast %33 : vector<8xf32> to vector<8x1xf32>
    %35 = vector.broadcast %34 : vector<8x1xf32> to vector<8x128xf32>
    %36 = arith.subf %32, %35 : vector<8x128xf32>
    %37 = math.exp %36 : vector<8x128xf32>
    %cst_15 = arith.constant dense<0.000000e+00> : vector<8xf32>
    %38 = vector.multi_reduction <add>, %37, %cst_15 [1] : vector<8x128xf32> to vector<8xf32>
    %39 = vector.shape_cast %38 : vector<8xf32> to vector<8x1xf32>
    %40 = vector.broadcast %39 : vector<8x1xf32> to vector<8x128xf32>
    %41 = arith.divf %37, %40 : vector<8x128xf32>
    %42 = tpu.concatenate %25, %41 in 0 : vector<8x128xf32>, vector<8x128xf32> -> vector<16x128xf32>
    %cst_16 = arith.constant dense<0.000000e+00> : vector<16x32xf32>
    %43 = tpu.matmul %42, %4, %cst_16 {dimension_numbers = #tpu.dot_dimension_numbers<[1], [1], [0], [0], [0, 0, 1, 0], [], []>} : vector<16x128xf32>, vector<32x128xf32>, vector<16x32xf32> -> vector<16x32xf32>
    %44 = vector.shape_cast %43 : vector<16x32xf32> to vector<2x8x32xf32>
    %c0_17 = arith.constant 0 : index
    %c0_18 = arith.constant 0 : index
    %c0_19 = arith.constant 0 : index
    %45 = vector.load %arg13[%c0_17, %c0_18, %c0_19] : memref<2x8x32xf32, #tpu.memory_space<vmem>>, vector<2x8x32xf32>
    tpu.vector_store %arg13[%c0_17, %c0_18, %c0_19], %44 {strides = array<i32>} : memref<2x8x32xf32, #tpu.memory_space<vmem>>, vector<2x8x32xf32>,
    %c0_20 = arith.constant 0 : index
    %c0_21 = arith.constant 0 : index
    %46 = vector.load %arg10[%c0_20, %c0_21] : memref<8x32xf32, #tpu.memory_space<vmem>>, vector<8x32xf32>
    %47 = vector.shape_cast %46 : vector<8x32xf32> to vector<1x8x32xf32>
    %48 = vector.broadcast %47 : vector<1x8x32xf32> to vector<2x8x32xf32>
    %49 = arith.mulf %48, %44 : vector<2x8x32xf32>
    %cst_22 = arith.constant dense<0.000000e+00> : vector<2x8xf32>
    %50 = vector.multi_reduction <add>, %49, %cst_22 [2] : vector<2x8x32xf32> to vector<2x8xf32>
    %c0_23 = arith.constant 0 : index
    %c0_24 = arith.constant 0 : index
    %51 = vector.load %arg11[%c0_23, %c0_24] : memref<1x8xf32, #tpu.memory_space<vmem>>, vector<1x8xf32>
    %52 = vector.broadcast %51 : vector<1x8xf32> to vector<2x8xf32>
    %53 = arith.addf %50, %52 : vector<2x8xf32>
    %c0_25 = arith.constant 0 : index
    %c0_26 = arith.constant 0 : index
    %54 = vector.load %arg12[%c0_25, %c0_26] : memref<2x8xf32, #tpu.memory_space<vmem>>, vector<2x8xf32>
    tpu.vector_store %arg12[%c0_25, %c0_26], %53 {strides = array<i32>} : memref<2x8xf32, #tpu.memory_space<vmem>>, vector<2x8xf32>,
    %c0_27 = arith.constant 0 : index
    %c0_28 = arith.constant 0 : index
    %55 = vector.load %arg5[%c0_27, %c0_28] : memref<24x32xf32, #tpu.memory_space<vmem>>, vector<24x32xf32>
    %56 = tpu.concatenate %43, %55 in 0 : vector<16x32xf32>, vector<24x32xf32> -> vector<40x32xf32>
    %c0_29 = arith.constant 0 : index
    %c0_30 = arith.constant 0 : index
    %57 = vector.load %arg6[%c0_29, %c0_30] : memref<32x32xf32, #tpu.memory_space<vmem>>, vector<32x32xf32>
    %cst_31 = arith.constant dense<0.000000e+00> : vector<40x32xf32>
    %58 = tpu.matmul %56, %57, %cst_31 {dimension_numbers = #tpu.dot_dimension_numbers<[1], [0], [0], [1], [0, 0, 1, 1], [], []>} : vector<40x32xf32>, vector<32x32xf32>, vector<40x32xf32> -> vector<40x32xf32>
    %c0_32 = arith.constant 0 : index
    %c0_33 = arith.constant 0 : index
    %59 = vector.load %arg7[%c0_32, %c0_33] : memref<1x32xf32, #tpu.memory_space<vmem>>, vector<1x32xf32>
    %60 = vector.broadcast %59 : vector<1x32xf32> to vector<40x32xf32>
    %61 = arith.addf %58, %60 : vector<40x32xf32>
    %cst_34 = arith.constant 0.000000e+00 : f32
    %62 = vector.broadcast %cst_34 : f32 to vector<40x32xf32>
    %63 = arith.maximumf %61, %62 : vector<40x32xf32>
    %c0_35 = arith.constant 0 : index
    %c0_36 = arith.constant 0 : index
    %64 = vector.load %arg8[%c0_35, %c0_36] : memref<32x1024xbf16, #tpu.memory_space<vmem>>, vector<32x1024xbf16>
    %65 = arith.extf %64 : vector<32x1024xbf16> to vector<32x1024xf32>
    %cst_37 = arith.constant dense<0.000000e+00> : vector<40x1024xf32>
    %66 = tpu.matmul %63, %65, %cst_37 {dimension_numbers = #tpu.dot_dimension_numbers<[1], [0], [0], [1], [0, 0, 1, 1], [], []>} : vector<40x32xf32>, vector<32x1024xf32>, vector<40x1024xf32> -> vector<40x1024xf32>
    %c0_38 = arith.constant 0 : index
    %c0_39 = arith.constant 0 : index
    %67 = vector.load %arg9[%c0_38, %c0_39] : memref<1x1024xf32, #tpu.memory_space<vmem>>, vector<1x1024xf32>
    %68 = vector.broadcast %67 : vector<1x1024xf32> to vector<40x1024xf32>
    %69 = arith.addf %66, %68 : vector<40x1024xf32>
    %70 = vector.extract_strided_slice %69 {offsets = [0, 0], sizes = [16, 1024], strides = [1, 1]} : vector<40x1024xf32> to vector<16x1024xf32>
    %71 = vector.shape_cast %70 : vector<16x1024xf32> to vector<2x8x1024xf32>
    %c0_40 = arith.constant 0 : index
    %c0_41 = arith.constant 0 : index
    %c0_42 = arith.constant 0 : index
    %72 = vector.load %arg14[%c0_40, %c0_41, %c0_42] : memref<2x8x1024xf32, #tpu.memory_space<vmem>>, vector<2x8x1024xf32>
    tpu.vector_store %arg14[%c0_40, %c0_41, %c0_42], %71 {strides = array<i32>} : memref<2x8x1024xf32, #tpu.memory_space<vmem>>, vector<2x8x1024xf32>,
    %73 = vector.extract_strided_slice %69 {offsets = [16, 0], sizes = [16, 1024], strides = [1, 1]} : vector<40x1024xf32> to vector<16x1024xf32>
    %74 = vector.shape_cast %73 : vector<16x1024xf32> to vector<2x8x1024xf32>
    %c0_43 = arith.constant 0 : index
    %c0_44 = arith.constant 0 : index
    %c0_45 = arith.constant 0 : index
    %75 = vector.load %arg15[%c0_43, %c0_44, %c0_45] : memref<2x8x1024xf32, #tpu.memory_space<vmem>>, vector<2x8x1024xf32>
    tpu.vector_store %arg15[%c0_43, %c0_44, %c0_45], %74 {strides = array<i32>} : memref<2x8x1024xf32, #tpu.memory_space<vmem>>, vector<2x8x1024xf32>,
    %76 = vector.extract_strided_slice %69 {offsets = [32, 0], sizes = [8, 1024], strides = [1, 1]} : vector<40x1024xf32> to vector<8x1024xf32>
    %77 = vector.shape_cast %76 : vector<8x1024xf32> to vector<1x8x1024xf32>
    %c0_46 = arith.constant 0 : index
    %c0_47 = arith.constant 0 : index
    %c0_48 = arith.constant 0 : index
    %78 = vector.load %arg16[%c0_46, %c0_47, %c0_48] : memref<1x8x1024xf32, #tpu.memory_space<vmem>>, vector<1x8x1024xf32>
    tpu.vector_store %arg16[%c0_46, %c0_47, %c0_48], %77 {strides = array<i32>} : memref<1x8x1024xf32, #tpu.memory_space<vmem>>, vector<1x8x1024xf32>,
    return
  }
  func.func @transform_0(%arg0: i32) -> (i32, i32) {
    %c0_i32 = arith.constant 0 : i32
    %c0_i32_0 = arith.constant 0 : i32
    %c0_i32_1 = arith.constant 0 : i32
    return %c0_i32, %c0_i32_0 : i32, i32
  }
  func.func @transform_1(%arg0: i32) -> (i32, i32) {
    %c0_i32 = arith.constant 0 : i32
    %c0_i32_0 = arith.constant 0 : i32
    %c0_i32_1 = arith.constant 0 : i32
    return %c0_i32, %c0_i32_0 : i32, i32
  }
  func.func @transform_2(%arg0: i32) -> (i32, i32) {
    %c0_i32 = arith.constant 0 : i32
    %c0_i32_0 = arith.constant 0 : i32
    %c0_i32_1 = arith.constant 0 : i32
    return %c0_i32, %c0_i32_0 : i32, i32
  }
  func.func @transform_3(%arg0: i32) -> (i32, i32) {
    %c0_i32 = arith.constant 0 : i32
    %c0_i32_0 = arith.constant 0 : i32
    %c0_i32_1 = arith.constant 0 : i32
    return %c0_i32, %c0_i32_0 : i32, i32
  }
  func.func @transform_4(%arg0: i32) -> (i32, i32) {
    %c0_i32 = arith.constant 0 : i32
    %c0_i32_0 = arith.constant 0 : i32
    %c0_i32_1 = arith.constant 0 : i32
    return %c0_i32, %c0_i32_0 : i32, i32
  }
  func.func @transform_5(%arg0: i32) -> (i32, i32) {
    %c0_i32 = arith.constant 0 : i32
    %c0_i32_0 = arith.constant 0 : i32
    %c0_i32_1 = arith.constant 0 : i32
    return %c0_i32, %c0_i32_0 : i32, i32
  }
  func.func @transform_6(%arg0: i32) -> (i32, i32) {
    %c0_i32 = arith.constant 0 : i32
    %c0_i32_0 = arith.constant 0 : i32
    %c0_i32_1 = arith.constant 0 : i32
    return %c0_i32, %c0_i32_0 : i32, i32
  }
  func.func @transform_7(%arg0: i32) -> (i32, i32) {
    %c0_i32 = arith.constant 0 : i32
    %c0_i32_0 = arith.constant 0 : i32
    %c0_i32_1 = arith.constant 0 : i32
    return %c0_i32, %c0_i32_0 : i32, i32
  }
  func.func @transform_8(%arg0: i32) -> (i32, i32) {
    %c0_i32 = arith.constant 0 : i32
    %c0_i32_0 = arith.constant 0 : i32
    %c0_i32_1 = arith.constant 0 : i32
    return %c0_i32, %c0_i32_0 : i32, i32
  }
  func.func @transform_9(%arg0: i32) -> (i32, i32) {
    %c0_i32 = arith.constant 0 : i32
    %c0_i32_0 = arith.constant 0 : i32
    %c0_i32_1 = arith.constant 0 : i32
    return %c0_i32, %c0_i32_0 : i32, i32
  }
  func.func @transform_10(%arg0: i32) -> (i32, i32) {
    %c0_i32 = arith.constant 0 : i32
    %c0_i32_0 = arith.constant 0 : i32
    %c0_i32_1 = arith.constant 0 : i32
    return %c0_i32, %c0_i32_0 : i32, i32
  }
  func.func @transform_11(%arg0: i32) -> (i32, i32) {
    %c0_i32 = arith.constant 0 : i32
    %c0_i32_0 = arith.constant 0 : i32
    %c0_i32_1 = arith.constant 0 : i32
    return %c0_i32, %c0_i32_0 : i32, i32
  }
  func.func @transform_12(%arg0: i32) -> (i32, i32, i32) {
    %c0_i32 = arith.constant 0 : i32
    %c0_i32_0 = arith.constant 0 : i32
    %c0_i32_1 = arith.constant 0 : i32
    %c0_i32_2 = arith.constant 0 : i32
    return %c0_i32, %c0_i32_0, %c0_i32_1 : i32, i32, i32
  }
  func.func @transform_13(%arg0: i32) -> (i32, i32, i32) {
    %c0_i32 = arith.constant 0 : i32
    %c0_i32_0 = arith.constant 0 : i32
    %c0_i32_1 = arith.constant 0 : i32
    %c0_i32_2 = arith.constant 0 : i32
    return %c0_i32, %c0_i32_0, %c0_i32_1 : i32, i32, i32
  }
  func.func @transform_14(%arg0: i32) -> (i32, i32, i32) {
    %c0_i32 = arith.constant 0 : i32
    %c0_i32_0 = arith.constant 0 : i32
    %c0_i32_1 = arith.constant 0 : i32
    %c0_i32_2 = arith.constant 0 : i32
    return %c0_i32, %c0_i32_0, %c0_i32_1 : i32, i32, i32
  }
  func.func @transform_15(%arg0: i32) -> (i32, i32, i32) {
    %c0_i32 = arith.constant 0 : i32
    %c0_i32_0 = arith.constant 0 : i32
    %c0_i32_1 = arith.constant 0 : i32
    %c0_i32_2 = arith.constant 0 : i32
    return %c0_i32, %c0_i32_0, %c0_i32_1 : i32, i32, i32
  }
}

</mosaic_0001>

<llo_original>
// kernel: sadcl_forward.1
$region0: #{sadcl_forward.1}
  #allocation0 [shape = 'u32[]', space=smem, size = 0x4, offset = 0x4, fixed_abs, tag = 'smem constant byte address 0x4 - core index']
  #allocation1 [shape = 'u32[144,128]{1,0:T(1,128)}', space=vmem, size = 0x12000, scoped, tag = 'internal scratch']
  %s0 = inlined_call_operand.vmem [shape: f32[3,128], index: 0, kind: input, shape index: {}]
  %s1 = inlined_call_operand.vmem [shape: f32[32,3], index: 1, kind: input, shape index: {}]
  %s2 = inlined_call_operand.vmem [shape: f32[32,128], index: 2, kind: input, shape index: {}]
  %s3 = inlined_call_operand.vmem [shape: f32[8,32], index: 3, kind: input, shape index: {}]
  %s4 = inlined_call_operand.vmem [shape: f32[24,32], index: 4, kind: input, shape index: {}]
  %s5 = inlined_call_operand.vmem [shape: f32[32,32], index: 5, kind: input, shape index: {}]
  %s6 = inlined_call_operand.vmem [shape: f32[1,32], index: 6, kind: input, shape index: {}]
  %s7 = inlined_call_operand.vmem [shape: bf16[32,1024], index: 7, kind: input, shape index: {}]
  %s8 = inlined_call_operand.vmem [shape: f32[1,1024], index: 8, kind: input, shape index: {}]
  %s9 = inlined_call_operand.vmem [shape: f32[8,32], index: 9, kind: input, shape index: {}]
  %s10 = inlined_call_operand.vmem [shape: f32[1,8], index: 10, kind: input, shape index: {}]
  %s11 = inlined_call_operand.hbm [shape: f32[2,8], index: 11, kind: output, shape index: {0}]
  %s12 = inlined_call_operand.hbm [shape: f32[2,8,32], index: 12, kind: output, shape index: {1}]
  %s13 = inlined_call_operand.hbm [shape: f32[2,8,1024], index: 13, kind: output, shape index: {2}]
  %s14 = inlined_call_operand.hbm [shape: f32[2,8,1024], index: 14, kind: output, shape index: {3}]
  %s15 = inlined_call_operand.hbm [shape: f32[1,8,1024], index: 15, kind: output, shape index: {4}]
  %16 = xla_tuple %s11, %s12, %s13, %s14, %s15
  %s17 = sld [smem:[#allocation0]]
  $region86: #{sadcl_forward.1} parent=0
    _
  %s19 = ssub.s32 1, %s17
  %s20 = scalar_select 0, %s19, %s17
  $region1: #{sadcl_forward.1} parent=0
    #allocation2 [shape = 'u8[1024]{0}', space=vmem, size = 0x400, scoped, tag = 'output window, operand 0, single buffered']
    #allocation3 [shape = 's32[1]{0}', space=sflag, size = 0x4, scoped, tag = 'scoped memory for sadcl_forward.1']
    #allocation4 [shape = 'u8[8192]{0}', space=vmem, size = 0x2000, scoped, tag = 'output window, operand 1, single buffered']
    #allocation5 [shape = 's32[1]{0}', space=sflag, size = 0x4, scoped, tag = 'scoped memory for sadcl_forward.1']
    #allocation6 [shape = 'u8[65536]{0}', space=vmem, size = 0x10000, scoped, tag = 'output window, operand 2, single buffered']
    #allocation7 [shape = 'u8[65536]{0}', space=vmem, size = 0x10000, scoped, tag = 'output window, operand 3, single buffered']
    #allocation8 [shape = 's32[1]{0}', space=sflag, size = 0x4, scoped, tag = 'scoped memory for sadcl_forward.1']
    #allocation9 [shape = 'u8[32768]{0}', space=vmem, size = 0x8000, scoped, tag = 'output window, operand 4, single buffered']
    %21 = vsyncpa [#allocation3], 0
    %22 = vsyncpa [#allocation5], 0
    %23 = vsyncpa [#allocation8], 0
    // Predicated region
    $region2: #{sadcl_forward.1} parent=1 // pred_check
      _
    $region3: #{sadcl_forward.1} parent=1 // pred_check_branch
      %25 = sbr.rel (0) target = $region5
    $region4: #{sadcl_forward.1} parent=1 // pred_region
      _
    $region5: #{sadcl_forward.1} parent=1 // pred_fallthru
      _
    // Predicated region
    $region6: #{sadcl_forward.1} parent=1 // pred_check
      _
    $region7: #{sadcl_forward.1} parent=1 // pred_check_branch
      %27 = sbr.rel (0) target = $region9
    $region8: #{sadcl_forward.1} parent=1 // pred_region
      _
    $region9: #{sadcl_forward.1} parent=1 // pred_fallthru
      _
    // Predicated region
    $region10: #{sadcl_forward.1} parent=1 // pred_check
      _
    $region11: #{sadcl_forward.1} parent=1 // pred_check_branch
      %29 = sbr.rel (0) target = $region13
    $region12: #{sadcl_forward.1} parent=1 // pred_region
      _
    $region13: #{sadcl_forward.1} parent=1 // pred_fallthru
      _
    // Predicated region
    $region14: #{sadcl_forward.1} parent=1 // pred_check
      _
    $region15: #{sadcl_forward.1} parent=1 // pred_check_branch
      %31 = sbr.rel (0) target = $region17
    $region16: #{sadcl_forward.1} parent=1 // pred_region
      _
    $region17: #{sadcl_forward.1} parent=1 // pred_fallthru
      _
    // Predicated region
    $region18: #{sadcl_forward.1} parent=1 // pred_check
      _
    $region19: #{sadcl_forward.1} parent=1 // pred_check_branch
      %33 = sbr.rel (0) target = $region21
    $region20: #{sadcl_forward.1} parent=1 // pred_region
      _
    $region21: #{sadcl_forward.1} parent=1 // pred_fallthru
      _
    // Predicated region
    $region22: #{sadcl_forward.1} parent=1 // pred_check
      _
    $region23: #{sadcl_forward.1} parent=1 // pred_check_branch
      %35 = sbr.rel (0) target = $region25
    $region24: #{sadcl_forward.1} parent=1 // pred_region
      _
    $region25: #{sadcl_forward.1} parent=1 // pred_fallthru
      _
    // Predicated region
    $region26: #{sadcl_forward.1} parent=1 // pred_check
      _
    $region27: #{sadcl_forward.1} parent=1 // pred_check_branch
      %37 = sbr.rel (0) target = $region29
    $region28: #{sadcl_forward.1} parent=1 // pred_region
      _
    $region29: #{sadcl_forward.1} parent=1 // pred_fallthru
      _
    // Predicated region
    $region30: #{sadcl_forward.1} parent=1 // pred_check
      _
    $region31: #{sadcl_forward.1} parent=1 // pred_check_branch
      %39 = sbr.rel (0) target = $region33
    $region32: #{sadcl_forward.1} parent=1 // pred_region
      _
    $region33: #{sadcl_forward.1} parent=1 // pred_fallthru
      _
    // Predicated region
    $region34: #{sadcl_forward.1} parent=1 // pred_check
      _
    $region35: #{sadcl_forward.1} parent=1 // pred_check_branch
      %41 = sbr.rel (0) target = $region37
    $region36: #{sadcl_forward.1} parent=1 // pred_region
      _
    $region37: #{sadcl_forward.1} parent=1 // pred_fallthru
      _
    // Predicated region
    $region38: #{sadcl_forward.1} parent=1 // pred_check
      _
    $region39: #{sadcl_forward.1} parent=1 // pred_check_branch
      %43 = sbr.rel (0) target = $region41
    $region40: #{sadcl_forward.1} parent=1 // pred_region
      _
    $region41: #{sadcl_forward.1} parent=1 // pred_fallthru
      _
    // Predicated region
    $region42: #{sadcl_forward.1} parent=1 // pred_check
      _
    $region43: #{sadcl_forward.1} parent=1 // pred_check_branch
      %45 = sbr.rel (0) target = $region45
    $region44: #{sadcl_forward.1} parent=1 // pred_region
      _
    $region45: #{sadcl_forward.1} parent=1 // pred_fallthru
      _
    %v46 = vld [vmem:[%s1] sm:$0xff]
    %v47 = vld [vmem:[%s1 + $0x8] sm:$0xff]
    %v48 = vld [vmem:[%s1 + $0x10] sm:$0xff]
    %v49 = vld [vmem:[%s1 + $0x18] sm:$0xff]
    %v50 = vld [vmem:[%s0] sm:$0x7]
    %v51 = vld [vmem:[%s2] sm:$0xff]
    %v52 = vld [vmem:[%s2 + $0x8] sm:$0xff]
    %v53 = vld [vmem:[%s2 + $0x10] sm:$0xff]
    %v54 = vld [vmem:[%s2 + $0x18] sm:$0xff]
    %vm55 = vcmask 23552
    %v57 = vsel %vm55, %v46, 0
    %v60 = vsel %vm55, %v47, 0
    %v63 = vsel %vm55, %v48, 0
    %v66 = vsel %vm55, %v49, 0
    %vm68 = vcmask 1042432
    %v70 = vsel %vm68, %v50, 0
    %72 = vmatprep.subr.mxu0 0.0
    %73 = vmatpush1.msra.mxu0 0.0
    %74 = vmatprep.subr.mxu0 0.0
    %75 = vmatpush1.msra.mxu0 0.0
    %76 = vmatprep.subr.mxu0 0.0
    %77 = vmatpush1.msra.mxu0 0.0
    %78 = vmatprep.subr.mxu0 0.0
    %79 = vmatpush1.msra.mxu0 0.0
    %80 = vmatprep.subr.mxu0 0.0
    %81 = vmatpush1.msra.mxu0 0.0
    %82 = vmatprep.subr.mxu0 0.0
    %83 = vmatpush1.msra.mxu0 0.0
    %84 = vmatprep.subr.mxu0 0.0
    %85 = vmatpush1.msra.mxu0 0.0
    %86 = vmatprep.subr.mxu0 0.0
    %87 = vmatpush1.msra.mxu0 0.0
    %88 = vmatprep.subr.mxu0 0.0
    %89 = vmatpush1.msra.mxu0 0.0
    %90 = vmatprep.subr.mxu0 0.0
    %91 = vmatpush1.msra.mxu0 0.0
    %92 = vmatprep.subr.mxu0 0.0
    %93 = vmatpush1.msra.mxu0 0.0
    %94 = vmatprep.subr.mxu0 0.0
    %95 = vmatpush1.msra.mxu0 0.0
    %96 = vmatprep.subr.mxu0 0.0
    %97 = vmatpush1.msra.mxu0 0.0
    %98 = vmatprep.subr.mxu0 0.0
    %99 = vmatpush1.msra.mxu0 0.0
    %100 = vmatprep.subr.mxu0 0.0
    %101 = vmatpush1.msra.mxu0 0.0
    %102 = vmatprep.subr.mxu0 0.0
    %103 = vmatpush1.msra.mxu0 %v70
    %104 = vmatprep.subr.mxu0 0.0
    %105 = vmatpush2.msra.mxu0 0.0
    %106 = vmatprep.subr.mxu0 0.0
    %107 = vmatpush2.msra.mxu0 0.0
    %108 = vmatprep.subr.mxu0 0.0
    %109 = vmatpush2.msra.mxu0 0.0
    %110 = vmatprep.subr.mxu0 0.0
    %111 = vmatpush2.msra.mxu0 0.0
    %112 = vmatprep.subr.mxu0 0.0
    %113 = vmatpush2.msra.mxu0 0.0
    %114 = vmatprep.subr.mxu0 0.0
    %115 = vmatpush2.msra.mxu0 0.0
    %116 = vmatprep.subr.mxu0 0.0
    %117 = vmatpush2.msra.mxu0 0.0
    %118 = vmatprep.subr.mxu0 0.0
    %119 = vmatpush2.msra.mxu0 0.0
    %120 = vmatprep.subr.mxu0 0.0
    %121 = vmatpush2.msra.mxu0 0.0
    %122 = vmatprep.subr.mxu0 0.0
    %123 = vmatpush2.msra.mxu0 0.0
    %124 = vmatprep.subr.mxu0 0.0
    %125 = vmatpush2.msra.mxu0 0.0
    %126 = vmatprep.subr.mxu0 0.0
    %127 = vmatpush2.msra.mxu0 0.0
    %128 = vmatprep.subr.mxu0 0.0
    %129 = vmatpush2.msra.mxu0 0.0
    %130 = vmatprep.subr.mxu0 0.0
    %131 = vmatpush2.msra.mxu0 0.0
    %132 = vmatprep.subr.mxu0 0.0
    %133 = vmatpush2.msra.mxu0 0.0
    %134 = vmatprep.subr.mxu0 0.0
    %135 = vmatpush2.msra.mxu0 0.0
    %136 = vmatprep.mubr.f32.mxu0 0.0
    %137 = vmatmul.mubr.f32.gmra.mxu0 %v57
    %v138 = vpop.f32.mrf.mxu0
    %v139 = vadd.f32 %v51, %v138
    %v140 = vpop.f32.mrf.mxu0
    %141 = vmatprep.mubr.f32.mxu0 0.0
    %142 = vmatmul.mubr.f32.gmra.mxu0 %v60
    %v143 = vpop.f32.mrf.mxu0
    %v144 = vadd.f32 %v52, %v143
    %v145 = vpop.f32.mrf.mxu0
    %146 = vmatprep.mubr.f32.mxu0 0.0
    %147 = vmatmul.mubr.f32.gmra.mxu0 %v63
    %v148 = vpop.f32.mrf.mxu0
    %v149 = vadd.f32 %v53, %v148
    %v150 = vpop.f32.mrf.mxu0
    %151 = vmatprep.mubr.f32.mxu0 0.0
    %152 = vmatmul.mubr.f32.gmra.mxu0 %v66
    %v153 = vpop.f32.mrf.mxu0
    %v154 = vadd.f32 %v54, %v153
    %v155 = vpop.f32.mrf.mxu0
    %156 = vdwg.mxu0
    %v157 = vld [vmem:[%s3] sm:$0xff]
    %vm158 = vcmask 261120
    %v160 = vsel %vm158, %v157, 0
    %162 = vmatprep.subr.mxu0 0.0
    %163 = vmatpush1.msra.mxu0 0.0
    %164 = vmatprep.subr.mxu0 0.0
    %165 = vmatpush1.msra.mxu0 0.0
    %166 = vmatprep.subr.mxu0 0.0
    %167 = vmatpush1.msra.mxu0 0.0
    %168 = vmatprep.subr.mxu0 0.0
    %169 = vmatpush1.msra.mxu0 0.0
    %170 = vmatprep.subr.mxu0 0.0
    %171 = vmatpush1.msra.mxu0 0.0
    %172 = vmatprep.subr.mxu0 0.0
    %173 = vmatpush1.msra.mxu0 0.0
    %174 = vmatprep.subr.mxu0 0.0
    %175 = vmatpush1.msra.mxu0 0.0
    %176 = vmatprep.subr.mxu0 0.0
    %177 = vmatpush1.msra.mxu0 0.0
    %178 = vmatprep.subr.mxu0 0.0
    %179 = vmatpush1.msra.mxu0 0.0
    %180 = vmatprep.subr.mxu0 0.0
    %181 = vmatpush1.msra.mxu0 0.0
    %182 = vmatprep.subr.mxu0 0.0
    %183 = vmatpush1.msra.mxu0 0.0
    %184 = vmatprep.subr.mxu0 0.0
    %185 = vmatpush1.msra.mxu0 0.0
    %186 = vmatprep.subr.mxu0 0.0
    %187 = vmatpush1.msra.mxu0 %v154
    %188 = vmatprep.subr.mxu0 0.0
    %189 = vmatpush1.msra.mxu0 %v149
    %190 = vmatprep.subr.mxu0 0.0
    %191 = vmatpush1.msra.mxu0 %v144
    %192 = vmatprep.subr.mxu0 0.0
    %193 = vmatpush1.msra.mxu0 %v139
    %194 = vmatprep.subr.mxu0 0.0
    %195 = vmatpush2.msra.mxu0 0.0
    %196 = vmatprep.subr.mxu0 0.0
    %197 = vmatpush2.msra.mxu0 0.0
    %198 = vmatprep.subr.mxu0 0.0
    %199 = vmatpush2.msra.mxu0 0.0
    %200 = vmatprep.subr.mxu0 0.0
    %201 = vmatpush2.msra.mxu0 0.0
    %202 = vmatprep.subr.mxu0 0.0
    %203 = vmatpush2.msra.mxu0 0.0
    %204 = vmatprep.subr.mxu0 0.0
    %205 = vmatpush2.msra.mxu0 0.0
    %206 = vmatprep.subr.mxu0 0.0
    %207 = vmatpush2.msra.mxu0 0.0
    %208 = vmatprep.subr.mxu0 0.0
    %209 = vmatpush2.msra.mxu0 0.0
    %210 = vmatprep.subr.mxu0 0.0
    %211 = vmatpush2.msra.mxu0 0.0
    %212 = vmatprep.subr.mxu0 0.0
    %213 = vmatpush2.msra.mxu0 0.0
    %214 = vmatprep.subr.mxu0 0.0
    %215 = vmatpush2.msra.mxu0 0.0
    %216 = vmatprep.subr.mxu0 0.0
    %217 = vmatpush2.msra.mxu0 0.0
    %218 = vmatprep.subr.mxu0 0.0
    %219 = vmatpush2.msra.mxu0 0.0
    %220 = vmatprep.subr.mxu0 0.0
    %221 = vmatpush2.msra.mxu0 0.0
    %222 = vmatprep.subr.mxu0 0.0
    %223 = vmatpush2.msra.mxu0 0.0
    %224 = vmatprep.subr.mxu0 0.0
    %225 = vmatpush2.msra.mxu0 0.0
    %226 = vmatprep.mubr.f32.mxu0 0.0
    %227 = vmatmul.mubr.f32.gmra.mxu0 %v160
    %v228 = vpop.f32.mrf.mxu0
    %v229 = vadd.f32 0.0, %v228
    %v230 = vpop.f32.mrf.mxu0
    %231 = vdwg.mxu0
    %v232 = vmul.f32 %v229, 0.17677669
    %v233 = vlaneseq
    %v234 = vand.u32 %v233, 127
    %vm235 = vcmp.ge.s32.totalorder %v234, 0
    %vm236 = vcmp.lt.s32.totalorder %v234, 64
    %vm237 = vmand %vm235, %vm236
    %v238 = vsel %vm237, %v232, -inf
    %239 = vmax.xlane.f32.xlu0 %v238
    %v240 = vpop.xlane.xlu0 %239
    %v241 = vsub.f32 %v238, %v240
    %v242 = vmul.f32 %v241, 1.442695
    %v243 = vpow.pop %v242
    %244 = vadd.xlane.f32.xlu0 %v243
    %v245 = vpop.xlane.xlu0 %244
    %v246 = vrcp.pop %v245
    %v247 = vmul.f32 %v243, %v246
    %vm248 = vcmp.ge.s32.totalorder %v234, 64
    %vm249 = vcmp.lt.s32.totalorder %v234, 128
    %vm250 = vmand %vm248, %vm249
    %v251 = vsel %vm250, %v232, -inf
    %252 = vmax.xlane.f32.xlu0 %v251
    %v253 = vpop.xlane.xlu0 %252
    %v254 = vsub.f32 %v251, %v253
    %v255 = vmul.f32 %v254, 1.442695
    %v256 = vpow.pop %v255
    %257 = vadd.xlane.f32.xlu0 %v256
    %v258 = vpop.xlane.xlu0 %257
    %v259 = vrcp.pop %v258
    %v260 = vmul.f32 %v256, %v259
    %261 = vmatprep.subr.mxu0 0.0
    %262 = vmatpush1.xpose.msra.mxu0 0.0
    %263 = vmatprep.subr.mxu0 0.0
    %264 = vmatpush1.xpose.msra.mxu0 0.0
    %265 = vmatprep.subr.mxu0 0.0
    %266 = vmatpush1.xpose.msra.mxu0 0.0
    %267 = vmatprep.subr.mxu0 0.0
    %268 = vmatpush1.xpose.msra.mxu0 0.0
    %269 = vmatprep.subr.mxu0 0.0
    %270 = vmatpush1.xpose.msra.mxu0 0.0
    %271 = vmatprep.subr.mxu0 0.0
    %272 = vmatpush1.xpose.msra.mxu0 0.0
    %273 = vmatprep.subr.mxu0 0.0
    %274 = vmatpush1.xpose.msra.mxu0 0.0
    %275 = vmatprep.subr.mxu0 0.0
    %276 = vmatpush1.xpose.msra.mxu0 0.0
    %277 = vmatprep.subr.mxu0 0.0
    %278 = vmatpush1.xpose.msra.mxu0 0.0
    %279 = vmatprep.subr.mxu0 0.0
    %280 = vmatpush1.xpose.msra.mxu0 0.0
    %281 = vmatprep.subr.mxu0 0.0
    %282 = vmatpush1.xpose.msra.mxu0 0.0
    %283 = vmatprep.subr.mxu0 0.0
    %284 = vmatpush1.xpose.msra.mxu0 0.0
    %285 = vmatprep.subr.mxu0 0.0
    %286 = vmatpush1.xpose.msra.mxu0 %v154
    %287 = vmatprep.subr.mxu0 0.0
    %288 = vmatpush1.xpose.msra.mxu0 %v149
    %289 = vmatprep.subr.mxu0 0.0
    %290 = vmatpush1.xpose.msra.mxu0 %v144
    %291 = vmatprep.subr.mxu0 0.0
    %292 = vmatpush1.xpose.msra.mxu0 %v139
    %293 = vmatprep.subr.mxu0 0.0
    %294 = vmatpush2.xpose.msra.mxu0 0.0
    %295 = vmatprep.subr.mxu0 0.0
    %296 = vmatpush2.xpose.msra.mxu0 0.0
    %297 = vmatprep.subr.mxu0 0.0
    %298 = vmatpush2.xpose.msra.mxu0 0.0
    %299 = vmatprep.subr.mxu0 0.0
    %300 = vmatpush2.xpose.msra.mxu0 0.0
    %301 = vmatprep.subr.mxu0 0.0
    %302 = vmatpush2.xpose.msra.mxu0 0.0
    %303 = vmatprep.subr.mxu0 0.0
    %304 = vmatpush2.xpose.msra.mxu0 0.0
    %305 = vmatprep.subr.mxu0 0.0
    %306 = vmatpush2.xpose.msra.mxu0 0.0
    %307 = vmatprep.subr.mxu0 0.0
    %308 = vmatpush2.xpose.msra.mxu0 0.0
    %309 = vmatprep.subr.mxu0 0.0
    %310 = vmatpush2.xpose.msra.mxu0 0.0
    %311 = vmatprep.subr.mxu0 0.0
    %312 = vmatpush2.xpose.msra.mxu0 0.0
    %313 = vmatprep.subr.mxu0 0.0
    %314 = vmatpush2.xpose.msra.mxu0 0.0
    %315 = vmatprep.subr.mxu0 0.0
    %316 = vmatpush2.xpose.msra.mxu0 0.0
    %317 = vmatprep.subr.mxu0 0.0
    %318 = vmatpush2.xpose.msra.mxu0 0.0
    %319 = vmatprep.subr.mxu0 0.0
    %320 = vmatpush2.xpose.msra.mxu0 0.0
    %321 = vmatprep.subr.mxu0 0.0
    %322 = vmatpush2.xpose.msra.mxu0 0.0
    %323 = vmatprep.subr.mxu0 0.0
    %324 = vmatpush2.xpose.msra.mxu0 0.0
    %325 = vmatprep.mubr.f32.mxu0 0.0
    %326 = vmatmul.mubr.f32.gmra.mxu0 %v247
    %v327 = vpop.f32.mrf.mxu0
    %v328 = vadd.f32 0.0, %v327
    %v329 = vpop.f32.mrf.mxu0
    %330 = vmatprep.mubr.f32.mxu0 0.0
    %331 = vmatmul.mubr.f32.gmra.mxu0 %v260
    %v332 = vpop.f32.mrf.mxu0
    %v333 = vadd.f32 0.0, %v332
    %v334 = vpop.f32.mrf.mxu0
    %335 = vdwg.mxu0
    %336 = vst.msk [vmem:[#allocation4] sm:$0xff] %vm158, %v328
    %337 = vst.msk [vmem:[#allocation4 + $0x8] sm:$0xff] %vm158, %v333
    %v338 = vld [vmem:[%s9] sm:$0xff]
    %v339 = vmul.f32 %v338, %v328
    %v340 = vmul.f32 %v338, %v333
    %v341 = vsel %vm158, %v339, 0.0
    %342 = vadd.xlane.f32.xlu0 %v341
    %v343 = vpop.xlane.xlu0 %342
    %v344 = vsel %vm158, %v340, 0.0
    %345 = vadd.xlane.f32.xlu0 %v344
    %v346 = vpop.xlane.xlu0 %345
    %v347 = vld [vmem:[%s10] sm:$0x1]
    %v349 = vlaneseq
    %v350 = vshrl.u32 %v349, 7
    %v351 = vsub.s32 0, %v350
    %v352 = vrot.slane %v347, %v351
    %354 = vbcast.lane.b32.xlu0 %v352, 256
    %v355 = vpop.permute.xlu0 %354
    %v357 = vadd.f32 %v343, %v355
    %v358 = vadd.f32 %v346, %v355
    %361 = vset.pattern.permute.xlu0 0
    %362 = vperm.xlu0 %361, %v357
    %v363 = vpop.permute.xlu0 %362
    %364 = vset.pattern.permute.xlu0 0
    %365 = vperm.xlu0 %364, %v358
    %v366 = vpop.permute.xlu0 %365
    %v367 = vlaneseq
    %v368 = vshrl.u32 %v367, 7
    %v369 = vsub.s32 %v234, %v368
    %v370 = vrot.slane %v363, %v369
    %v371 = vlaneseq
    %v372 = vshrl.u32 %v371, 7
    %v373 = vsub.s32 %v234, %v372
    %v374 = vrot.slane %v366, %v373
    %vm375 = vcmask 1041409
    %v376 = vsel %vm375, %v374, %v370
    %vm378 = vcmask 58368
    %379 = vst.msk [vmem:[#allocation2] sm:$0x3] %vm378, %v376
    %v380 = vld [vmem:[%s4] sm:$0xff]
    %v381 = vld [vmem:[%s4 + $0x8] sm:$0xff]
    %v382 = vld [vmem:[%s4 + $0x10] sm:$0xff]
    %v383 = vld [vmem:[%s5] sm:$0xff]
    %v384 = vld [vmem:[%s5 + $0x8] sm:$0xff]
    %v385 = vld [vmem:[%s5 + $0x10] sm:$0xff]
    %v386 = vld [vmem:[%s5 + $0x18] sm:$0xff]
    %v387 = vld [vmem:[%s6] sm:$0x1]
    %v389 = vlaneseq
    %v390 = vshrl.u32 %v389, 7
    %v391 = vsub.s32 0, %v390
    %v392 = vrot.slane %v387, %v391
    %v395 = vsel %vm158, %v328, 0
    %v398 = vsel %vm158, %v333, 0
    %v401 = vsel %vm158, %v380, 0
    %v404 = vsel %vm158, %v381, 0
    %v407 = vsel %vm158, %v382, 0
    %409 = vmatprep.subr.mxu0 0.0
    %410 = vmatpush1.msra.mxu0 0.0
    %411 = vmatprep.subr.mxu0 0.0
    %412 = vmatpush1.msra.mxu0 0.0
    %413 = vmatprep.subr.mxu0 0.0
    %414 = vmatpush1.msra.mxu0 0.0
    %415 = vmatprep.subr.mxu0 0.0
    %416 = vmatpush1.msra.mxu0 0.0
    %417 = vmatprep.subr.mxu0 0.0
    %418 = vmatpush1.msra.mxu0 0.0
    %419 = vmatprep.subr.mxu0 0.0
    %420 = vmatpush1.msra.mxu0 0.0
    %421 = vmatprep.subr.mxu0 0.0
    %422 = vmatpush1.msra.mxu0 0.0
    %423 = vmatprep.subr.mxu0 0.0
    %424 = vmatpush1.msra.mxu0 0.0
    %425 = vmatprep.subr.mxu0 0.0
    %426 = vmatpush1.msra.mxu0 0.0
    %427 = vmatprep.subr.mxu0 0.0
    %428 = vmatpush1.msra.mxu0 0.0
    %429 = vmatprep.subr.mxu0 0.0
    %430 = vmatpush1.msra.mxu0 0.0
    %431 = vmatprep.subr.mxu0 0.0
    %432 = vmatpush1.msra.mxu0 0.0
    %433 = vmatprep.subr.mxu0 0.0
    %434 = vmatpush1.msra.mxu0 %v386
    %435 = vmatprep.subr.mxu0 0.0
    %436 = vmatpush1.msra.mxu0 %v385
    %437 = vmatprep.subr.mxu0 0.0
    %438 = vmatpush1.msra.mxu0 %v384
    %439 = vmatprep.subr.mxu0 0.0
    %440 = vmatpush1.msra.mxu0 %v383
    %441 = vmatprep.subr.mxu0 0.0
    %442 = vmatpush2.msra.mxu0 0.0
    %443 = vmatprep.subr.mxu0 0.0
    %444 = vmatpush2.msra.mxu0 0.0
    %445 = vmatprep.subr.mxu0 0.0
    %446 = vmatpush2.msra.mxu0 0.0
    %447 = vmatprep.subr.mxu0 0.0
    %448 = vmatpush2.msra.mxu0 0.0
    %449 = vmatprep.subr.mxu0 0.0
    %450 = vmatpush2.msra.mxu0 0.0
    %451 = vmatprep.subr.mxu0 0.0
    %452 = vmatpush2.msra.mxu0 0.0
    %453 = vmatprep.subr.mxu0 0.0
    %454 = vmatpush2.msra.mxu0 0.0
    %455 = vmatprep.subr.mxu0 0.0
    %456 = vmatpush2.msra.mxu0 0.0
    %457 = vmatprep.subr.mxu0 0.0
    %458 = vmatpush2.msra.mxu0 0.0
    %459 = vmatprep.subr.mxu0 0.0
    %460 = vmatpush2.msra.mxu0 0.0
    %461 = vmatprep.subr.mxu0 0.0
    %462 = vmatpush2.msra.mxu0 0.0
    %463 = vmatprep.subr.mxu0 0.0
    %464 = vmatpush2.msra.mxu0 0.0
    %465 = vmatprep.subr.mxu0 0.0
    %466 = vmatpush2.msra.mxu0 0.0
    %467 = vmatprep.subr.mxu0 0.0
    %468 = vmatpush2.msra.mxu0 0.0
    %469 = vmatprep.subr.mxu0 0.0
    %470 = vmatpush2.msra.mxu0 0.0
    %471 = vmatprep.subr.mxu0 0.0
    %472 = vmatpush2.msra.mxu0 0.0
    %473 = vmatprep.mubr.f32.mxu0 0.0
    %474 = vmatmul.mubr.f32.gmra.mxu0 %v395
    %v475 = vpop.f32.mrf.mxu0
    %v476 = vadd.f32 %v392, %v475
    %v477 = vpop.f32.mrf.mxu0
    %478 = vmatprep.mubr.f32.mxu0 0.0
    %479 = vmatmul.mubr.f32.gmra.mxu0 %v398
    %v480 = vpop.f32.mrf.mxu0
    %v481 = vadd.f32 %v392, %v480
    %v482 = vpop.f32.mrf.mxu0
    %483 = vmatprep.mubr.f32.mxu0 0.0
    %484 = vmatmul.mubr.f32.gmra.mxu0 %v401
    %v485 = vpop.f32.mrf.mxu0
    %v486 = vadd.f32 %v392, %v485
    %v487 = vpop.f32.mrf.mxu0
    %488 = vmatprep.mubr.f32.mxu0 0.0
    %489 = vmatmul.mubr.f32.gmra.mxu0 %v404
    %v490 = vpop.f32.mrf.mxu0
    %v491 = vadd.f32 %v392, %v490
    %v492 = vpop.f32.mrf.mxu0
    %493 = vmatprep.mubr.f32.mxu0 0.0
    %494 = vmatmul.mubr.f32.gmra.mxu0 %v407
    %v495 = vpop.f32.mrf.mxu0
    %v496 = vadd.f32 %v392, %v495
    %v497 = vpop.f32.mrf.mxu0
    %498 = vdwg.mxu0
    %v499 = vmax.f32 %v476, 0.0
    %v500 = vmax.f32 %v481, 0.0
    %v501 = vmax.f32 %v486, 0.0
    %v502 = vmax.f32 %v491, 0.0
    %v503 = vmax.f32 %v496, 0.0
    %v504 = vld [vmem:[%s7] sm:$0xff]
    %v505 = vld [vmem:[%s7 + $0x8] sm:$0xff]
    %v506 = vld [vmem:[%s7 + $0x10] sm:$0xff]
    %v507 = vld [vmem:[%s7 + $0x18] sm:$0xff]
    %v508 = vld [vmem:[%s7 + $0x20] sm:$0xff]
    %v509 = vld [vmem:[%s7 + $0x28] sm:$0xff]
    %v510 = vld [vmem:[%s7 + $0x30] sm:$0xff]
    %v511 = vld [vmem:[%s7 + $0x38] sm:$0xff]
    %v512 = vld [vmem:[%s7 + $0x40] sm:$0xff]
    %v513 = vld [vmem:[%s7 + $0x48] sm:$0xff]
    %v514 = vld [vmem:[%s7 + $0x50] sm:$0xff]
    %v515 = vld [vmem:[%s7 + $0x58] sm:$0xff]
    %v516 = vld [vmem:[%s7 + $0x60] sm:$0xff]
    %v517 = vld [vmem:[%s7 + $0x68] sm:$0xff]
    %v518 = vld [vmem:[%s7 + $0x70] sm:$0xff]
    %v519 = vld [vmem:[%s7 + $0x78] sm:$0xff]
    %v520 = vunpack.c.l.bf16 %v504
    %v521 = vunpack.c.h.bf16 %v504
    %v522 = vunpack.c.l.bf16 %v505
    %v523 = vunpack.c.h.bf16 %v505
    %v524 = vunpack.c.l.bf16 %v506
    %v525 = vunpack.c.h.bf16 %v506
    %v526 = vunpack.c.l.bf16 %v507
    %v527 = vunpack.c.h.bf16 %v507
    %v528 = vunpack.c.l.bf16 %v508
    %v529 = vunpack.c.h.bf16 %v508
    %v530 = vunpack.c.l.bf16 %v509
    %v531 = vunpack.c.h.bf16 %v509
    %v532 = vunpack.c.l.bf16 %v510
    %v533 = vunpack.c.h.bf16 %v510
    %v534 = vunpack.c.l.bf16 %v511
    %v535 = vunpack.c.h.bf16 %v511
    %v536 = vunpack.c.l.bf16 %v512
    %v537 = vunpack.c.h.bf16 %v512
    %v538 = vunpack.c.l.bf16 %v513
    %v539 = vunpack.c.h.bf16 %v513
    %v540 = vunpack.c.l.bf16 %v514
    %v541 = vunpack.c.h.bf16 %v514
    %v542 = vunpack.c.l.bf16 %v515
    %v543 = vunpack.c.h.bf16 %v515
    %v544 = vunpack.c.l.bf16 %v516
    %v545 = vunpack.c.h.bf16 %v516
    %v546 = vunpack.c.l.bf16 %v517
    %v547 = vunpack.c.h.bf16 %v517
    %v548 = vunpack.c.l.bf16 %v518
    %v549 = vunpack.c.h.bf16 %v518
    %v550 = vunpack.c.l.bf16 %v519
    %v551 = vunpack.c.h.bf16 %v519
    %v552 = vld [vmem:[%s8] sm:$0xff]
    %v554 = vlaneseq
    %v555 = vshrl.u32 %v554, 7
    %v556 = vsub.s32 0, %v555
    %v557 = vrot.slane %v552, %v556
    %v558 = vlaneseq
    %v559 = vshrl.u32 %v558, 7
    %v560 = vsub.s32 1, %v559
    %v561 = vrot.slane %v552, %v560
    %v562 = vlaneseq
    %v563 = vshrl.u32 %v562, 7
    %v564 = vsub.s32 2, %v563
    %v565 = vrot.slane %v552, %v564
    %v566 = vlaneseq
    %v567 = vshrl.u32 %v566, 7
    %v568 = vsub.s32 3, %v567
    %v569 = vrot.slane %v552, %v568
    %v570 = vlaneseq
    %v571 = vshrl.u32 %v570, 7
    %v572 = vsub.s32 4, %v571
    %v573 = vrot.slane %v552, %v572
    %v574 = vlaneseq
    %v575 = vshrl.u32 %v574, 7
    %v576 = vsub.s32 5, %v575
    %v577 = vrot.slane %v552, %v576
    %v578 = vlaneseq
    %v579 = vshrl.u32 %v578, 7
    %v580 = vsub.s32 6, %v579
    %v581 = vrot.slane %v552, %v580
    %v582 = vlaneseq
    %v583 = vshrl.u32 %v582, 7
    %v584 = vsub.s32 7, %v583
    %v585 = vrot.slane %v552, %v584
    %v595 = vsel %vm158, %v499, 0
    %v598 = vsel %vm158, %v500, 0
    %v601 = vsel %vm158, %v501, 0
    %v604 = vsel %vm158, %v502, 0
    %v607 = vsel %vm158, %v503, 0
    %609 = vmatprep.subr.mxu0 0.0
    %610 = vmatpush1.msra.mxu0 0.0
    %611 = vmatprep.subr.mxu0 0.0
    %612 = vmatpush1.msra.mxu0 0.0
    %613 = vmatprep.subr.mxu0 0.0
    %614 = vmatpush1.msra.mxu0 0.0
    %615 = vmatprep.subr.mxu0 0.0
    %616 = vmatpush1.msra.mxu0 0.0
    %617 = vmatprep.subr.mxu0 0.0
    %618 = vmatpush1.msra.mxu0 0.0
    %619 = vmatprep.subr.mxu0 0.0
    %620 = vmatpush1.msra.mxu0 0.0
    %621 = vmatprep.subr.mxu0 0.0
    %622 = vmatpush1.msra.mxu0 0.0
    %623 = vmatprep.subr.mxu0 0.0
    %624 = vmatpush1.msra.mxu0 0.0
    %625 = vmatprep.subr.mxu0 0.0
    %626 = vmatpush1.msra.mxu0 0.0
    %627 = vmatprep.subr.mxu0 0.0
    %628 = vmatpush1.msra.mxu0 0.0
    %629 = vmatprep.subr.mxu0 0.0
    %630 = vmatpush1.msra.mxu0 0.0
    %631 = vmatprep.subr.mxu0 0.0
    %632 = vmatpush1.msra.mxu0 0.0
    %633 = vmatprep.subr.mxu0 %v545
    %634 = vmatpush1.msra.mxu0 %v544
    %635 = vmatprep.subr.mxu0 %v537
    %636 = vmatpush1.msra.mxu0 %v536
    %637 = vmatprep.subr.mxu0 %v529
    %638 = vmatpush1.msra.mxu0 %v528
    %639 = vmatprep.subr.mxu0 %v521
    %640 = vmatpush1.msra.mxu0 %v520
    %641 = vmatprep.subr.mxu0 0.0
    %642 = vmatpush2.msra.mxu0 0.0
    %643 = vmatprep.subr.mxu0 0.0
    %644 = vmatpush2.msra.mxu0 0.0
    %645 = vmatprep.subr.mxu0 0.0
    %646 = vmatpush2.msra.mxu0 0.0
    %647 = vmatprep.subr.mxu0 0.0
    %648 = vmatpush2.msra.mxu0 0.0
    %649 = vmatprep.subr.mxu0 0.0
    %650 = vmatpush2.msra.mxu0 0.0
    %651 = vmatprep.subr.mxu0 0.0
    %652 = vmatpush2.msra.mxu0 0.0
    %653 = vmatprep.subr.mxu0 0.0
    %654 = vmatpush2.msra.mxu0 0.0
    %655 = vmatprep.subr.mxu0 0.0
    %656 = vmatpush2.msra.mxu0 0.0
    %657 = vmatprep.subr.mxu0 0.0
    %658 = vmatpush2.msra.mxu0 0.0
    %659 = vmatprep.subr.mxu0 0.0
    %660 = vmatpush2.msra.mxu0 0.0
    %661 = vmatprep.subr.mxu0 0.0
    %662 = vmatpush2.msra.mxu0 0.0
    %663 = vmatprep.subr.mxu0 0.0
    %664 = vmatpush2.msra.mxu0 0.0
    %665 = vmatprep.subr.mxu0 0.0
    %666 = vmatpush2.msra.mxu0 0.0
    %667 = vmatprep.subr.mxu0 0.0
    %668 = vmatpush2.msra.mxu0 0.0
    %669 = vmatprep.subr.mxu0 0.0
    %670 = vmatpush2.msra.mxu0 0.0
    %671 = vmatprep.subr.mxu0 0.0
    %672 = vmatpush2.msra.mxu0 0.0
    %673 = vmatprep.mubr.f32.mxu0 0.0
    %674 = vmatmul.mubr.f32.gmra.mxu0 %v595
    %v675 = vpop.f32.mrf.mxu0
    %v676 = vadd.f32 %v557, %v675
    %v677 = vpop.f32.mrf.mxu0
    %v678 = vadd.f32 %v561, %v677
    %679 = vmatprep.mubr.f32.mxu0 0.0
    %680 = vmatmul.mubr.f32.gmra.mxu0 %v598
    %v681 = vpop.f32.mrf.mxu0
    %v682 = vadd.f32 %v557, %v681
    %v683 = vpop.f32.mrf.mxu0
    %v684 = vadd.f32 %v561, %v683
    %685 = vmatprep.mubr.f32.mxu0 0.0
    %686 = vmatmul.mubr.f32.gmra.mxu0 %v601
    %v687 = vpop.f32.mrf.mxu0
    %v688 = vadd.f32 %v557, %v687
    %v689 = vpop.f32.mrf.mxu0
    %v690 = vadd.f32 %v561, %v689
    %691 = vmatprep.mubr.f32.mxu0 0.0
    %692 = vmatmul.mubr.f32.gmra.mxu0 %v604
    %v693 = vpop.f32.mrf.mxu0
    %v694 = vadd.f32 %v557, %v693
    %v695 = vpop.f32.mrf.mxu0
    %v696 = vadd.f32 %v561, %v695
    %697 = vmatprep.mubr.f32.mxu0 0.0
    %698 = vmatmul.mubr.f32.gmra.mxu0 %v607
    %v699 = vpop.f32.mrf.mxu0
    %v700 = vadd.f32 %v557, %v699
    %v701 = vpop.f32.mrf.mxu0
    %v702 = vadd.f32 %v561, %v701
    %703 = vdwg.mxu0
    %704 = vmatprep.subr.mxu0 0.0
    %705 = vmatpush1.msra.mxu0 0.0
    %706 = vmatprep.subr.mxu0 0.0
    %707 = vmatpush1.msra.mxu0 0.0
    %708 = vmatprep.subr.mxu0 0.0
    %709 = vmatpush1.msra.mxu0 0.0
    %710 = vmatprep.subr.mxu0 0.0
    %711 = vmatpush1.msra.mxu0 0.0
    %712 = vmatprep.subr.mxu0 0.0
    %713 = vmatpush1.msra.mxu0 0.0
    %714 = vmatprep.subr.mxu0 0.0
    %715 = vmatpush1.msra.mxu0 0.0
    %716 = vmatprep.subr.mxu0 0.0
    %717 = vmatpush1.msra.mxu0 0.0
    %718 = vmatprep.subr.mxu0 0.0
    %719 = vmatpush1.msra.mxu0 0.0
    %720 = vmatprep.subr.mxu0 0.0
    %721 = vmatpush1.msra.mxu0 0.0
    %722 = vmatprep.subr.mxu0 0.0
    %723 = vmatpush1.msra.mxu0 0.0
    %724 = vmatprep.subr.mxu0 0.0
    %725 = vmatpush1.msra.mxu0 0.0
    %726 = vmatprep.subr.mxu0 0.0
    %727 = vmatpush1.msra.mxu0 0.0
    %728 = vmatprep.subr.mxu0 %v547
    %729 = vmatpush1.msra.mxu0 %v546
    %730 = vmatprep.subr.mxu0 %v539
    %731 = vmatpush1.msra.mxu0 %v538
    %732 = vmatprep.subr.mxu0 %v531
    %733 = vmatpush1.msra.mxu0 %v530
    %734 = vmatprep.subr.mxu0 %v523
    %735 = vmatpush1.msra.mxu0 %v522
    %736 = vmatprep.subr.mxu0 0.0
    %737 = vmatpush2.msra.mxu0 0.0
    %738 = vmatprep.subr.mxu0 0.0
    %739 = vmatpush2.msra.mxu0 0.0
    %740 = vmatprep.subr.mxu0 0.0
    %741 = vmatpush2.msra.mxu0 0.0
    %742 = vmatprep.subr.mxu0 0.0
    %743 = vmatpush2.msra.mxu0 0.0
    %744 = vmatprep.subr.mxu0 0.0
    %745 = vmatpush2.msra.mxu0 0.0
    %746 = vmatprep.subr.mxu0 0.0
    %747 = vmatpush2.msra.mxu0 0.0
    %748 = vmatprep.subr.mxu0 0.0
    %749 = vmatpush2.msra.mxu0 0.0
    %750 = vmatprep.subr.mxu0 0.0
    %751 = vmatpush2.msra.mxu0 0.0
    %752 = vmatprep.subr.mxu0 0.0
    %753 = vmatpush2.msra.mxu0 0.0
    %754 = vmatprep.subr.mxu0 0.0
    %755 = vmatpush2.msra.mxu0 0.0
    %756 = vmatprep.subr.mxu0 0.0
    %757 = vmatpush2.msra.mxu0 0.0
    %758 = vmatprep.subr.mxu0 0.0
    %759 = vmatpush2.msra.mxu0 0.0
    %760 = vmatprep.subr.mxu0 0.0
    %761 = vmatpush2.msra.mxu0 0.0
    %762 = vmatprep.subr.mxu0 0.0
    %763 = vmatpush2.msra.mxu0 0.0
    %764 = vmatprep.subr.mxu0 0.0
    %765 = vmatpush2.msra.mxu0 0.0
    %766 = vmatprep.subr.mxu0 0.0
    %767 = vmatpush2.msra.mxu0 0.0
    %768 = vmatprep.mubr.f32.mxu0 0.0
    %769 = vmatmul.mubr.f32.gmra.mxu0 %v595
    %v770 = vpop.f32.mrf.mxu0
    %v771 = vadd.f32 %v565, %v770
    %v772 = vpop.f32.mrf.mxu0
    %v773 = vadd.f32 %v569, %v772
    %774 = vmatprep.mubr.f32.mxu0 0.0
    %775 = vmatmul.mubr.f32.gmra.mxu0 %v598
    %v776 = vpop.f32.mrf.mxu0
    %v777 = vadd.f32 %v565, %v776
    %v778 = vpop.f32.mrf.mxu0
    %v779 = vadd.f32 %v569, %v778
    %780 = vmatprep.mubr.f32.mxu0 0.0
    %781 = vmatmul.mubr.f32.gmra.mxu0 %v601
    %v782 = vpop.f32.mrf.mxu0
    %v783 = vadd.f32 %v565, %v782
    %v784 = vpop.f32.mrf.mxu0
    %v785 = vadd.f32 %v569, %v784
    %786 = vmatprep.mubr.f32.mxu0 0.0
    %787 = vmatmul.mubr.f32.gmra.mxu0 %v604
    %v788 = vpop.f32.mrf.mxu0
    %v789 = vadd.f32 %v565, %v788
    %v790 = vpop.f32.mrf.mxu0
    %v791 = vadd.f32 %v569, %v790
    %792 = vmatprep.mubr.f32.mxu0 0.0
    %793 = vmatmul.mubr.f32.gmra.mxu0 %v607
    %v794 = vpop.f32.mrf.mxu0
    %v795 = vadd.f32 %v565, %v794
    %v796 = vpop.f32.mrf.mxu0
    %v797 = vadd.f32 %v569, %v796
    %798 = vdwg.mxu0
    %799 = vmatprep.subr.mxu0 0.0
    %800 = vmatpush1.msra.mxu0 0.0
    %801 = vmatprep.subr.mxu0 0.0
    %802 = vmatpush1.msra.mxu0 0.0
    %803 = vmatprep.subr.mxu0 0.0
    %804 = vmatpush1.msra.mxu0 0.0
    %805 = vmatprep.subr.mxu0 0.0
    %806 = vmatpush1.msra.mxu0 0.0
    %807 = vmatprep.subr.mxu0 0.0
    %808 = vmatpush1.msra.mxu0 0.0
    %809 = vmatprep.subr.mxu0 0.0
    %810 = vmatpush1.msra.mxu0 0.0
    %811 = vmatprep.subr.mxu0 0.0
    %812 = vmatpush1.msra.mxu0 0.0
    %813 = vmatprep.subr.mxu0 0.0
    %814 = vmatpush1.msra.mxu0 0.0
    %815 = vmatprep.subr.mxu0 0.0
    %816 = vmatpush1.msra.mxu0 0.0
    %817 = vmatprep.subr.mxu0 0.0
    %818 = vmatpush1.msra.mxu0 0.0
    %819 = vmatprep.subr.mxu0 0.0
    %820 = vmatpush1.msra.mxu0 0.0
    %821 = vmatprep.subr.mxu0 0.0
    %822 = vmatpush1.msra.mxu0 0.0
    %823 = vmatprep.subr.mxu0 %v549
    %824 = vmatpush1.msra.mxu0 %v548
    %825 = vmatprep.subr.mxu0 %v541
    %826 = vmatpush1.msra.mxu0 %v540
    %827 = vmatprep.subr.mxu0 %v533
    %828 = vmatpush1.msra.mxu0 %v532
    %829 = vmatprep.subr.mxu0 %v525
    %830 = vmatpush1.msra.mxu0 %v524
    %831 = vmatprep.subr.mxu0 0.0
    %832 = vmatpush2.msra.mxu0 0.0
    %833 = vmatprep.subr.mxu0 0.0
    %834 = vmatpush2.msra.mxu0 0.0
    %835 = vmatprep.subr.mxu0 0.0
    %836 = vmatpush2.msra.mxu0 0.0
    %837 = vmatprep.subr.mxu0 0.0
    %838 = vmatpush2.msra.mxu0 0.0
    %839 = vmatprep.subr.mxu0 0.0
    %840 = vmatpush2.msra.mxu0 0.0
    %841 = vmatprep.subr.mxu0 0.0
    %842 = vmatpush2.msra.mxu0 0.0
    %843 = vmatprep.subr.mxu0 0.0
    %844 = vmatpush2.msra.mxu0 0.0
    %845 = vmatprep.subr.mxu0 0.0
    %846 = vmatpush2.msra.mxu0 0.0
    %847 = vmatprep.subr.mxu0 0.0
    %848 = vmatpush2.msra.mxu0 0.0
    %849 = vmatprep.subr.mxu0 0.0
    %850 = vmatpush2.msra.mxu0 0.0
    %851 = vmatprep.subr.mxu0 0.0
    %852 = vmatpush2.msra.mxu0 0.0
    %853 = vmatprep.subr.mxu0 0.0
    %854 = vmatpush2.msra.mxu0 0.0
    %855 = vmatprep.subr.mxu0 0.0
    %856 = vmatpush2.msra.mxu0 0.0
    %857 = vmatprep.subr.mxu0 0.0
    %858 = vmatpush2.msra.mxu0 0.0
    %859 = vmatprep.subr.mxu0 0.0
    %860 = vmatpush2.msra.mxu0 0.0
    %861 = vmatprep.subr.mxu0 0.0
    %862 = vmatpush2.msra.mxu0 0.0
    %863 = vmatprep.mubr.f32.mxu0 0.0
    %864 = vmatmul.mubr.f32.gmra.mxu0 %v595
    %v865 = vpop.f32.mrf.mxu0
    %v866 = vadd.f32 %v573, %v865
    %v867 = vpop.f32.mrf.mxu0
    %v868 = vadd.f32 %v577, %v867
    %869 = vmatprep.mubr.f32.mxu0 0.0
    %870 = vmatmul.mubr.f32.gmra.mxu0 %v598
    %v871 = vpop.f32.mrf.mxu0
    %v872 = vadd.f32 %v573, %v871
    %v873 = vpop.f32.mrf.mxu0
    %v874 = vadd.f32 %v577, %v873
    %875 = vmatprep.mubr.f32.mxu0 0.0
    %876 = vmatmul.mubr.f32.gmra.mxu0 %v601
    %v877 = vpop.f32.mrf.mxu0
    %v878 = vadd.f32 %v573, %v877
    %v879 = vpop.f32.mrf.mxu0
    %v880 = vadd.f32 %v577, %v879
    %881 = vmatprep.mubr.f32.mxu0 0.0
    %882 = vmatmul.mubr.f32.gmra.mxu0 %v604
    %v883 = vpop.f32.mrf.mxu0
    %v884 = vadd.f32 %v573, %v883
    %v885 = vpop.f32.mrf.mxu0
    %v886 = vadd.f32 %v577, %v885
    %887 = vmatprep.mubr.f32.mxu0 0.0
    %888 = vmatmul.mubr.f32.gmra.mxu0 %v607
    %v889 = vpop.f32.mrf.mxu0
    %v890 = vadd.f32 %v573, %v889
    %v891 = vpop.f32.mrf.mxu0
    %v892 = vadd.f32 %v577, %v891
    %893 = vdwg.mxu0
    %894 = vmatprep.subr.mxu0 0.0
    %895 = vmatpush1.msra.mxu0 0.0
    %896 = vmatprep.subr.mxu0 0.0
    %897 = vmatpush1.msra.mxu0 0.0
    %898 = vmatprep.subr.mxu0 0.0
    %899 = vmatpush1.msra.mxu0 0.0
    %900 = vmatprep.subr.mxu0 0.0
    %901 = vmatpush1.msra.mxu0 0.0
    %902 = vmatprep.subr.mxu0 0.0
    %903 = vmatpush1.msra.mxu0 0.0
    %904 = vmatprep.subr.mxu0 0.0
    %905 = vmatpush1.msra.mxu0 0.0
    %906 = vmatprep.subr.mxu0 0.0
    %907 = vmatpush1.msra.mxu0 0.0
    %908 = vmatprep.subr.mxu0 0.0
    %909 = vmatpush1.msra.mxu0 0.0
    %910 = vmatprep.subr.mxu0 0.0
    %911 = vmatpush1.msra.mxu0 0.0
    %912 = vmatprep.subr.mxu0 0.0
    %913 = vmatpush1.msra.mxu0 0.0
    %914 = vmatprep.subr.mxu0 0.0
    %915 = vmatpush1.msra.mxu0 0.0
    %916 = vmatprep.subr.mxu0 0.0
    %917 = vmatpush1.msra.mxu0 0.0
    %918 = vmatprep.subr.mxu0 %v551
    %919 = vmatpush1.msra.mxu0 %v550
    %920 = vmatprep.subr.mxu0 %v543
    %921 = vmatpush1.msra.mxu0 %v542
    %922 = vmatprep.subr.mxu0 %v535
    %923 = vmatpush1.msra.mxu0 %v534
    %924 = vmatprep.subr.mxu0 %v527
    %925 = vmatpush1.msra.mxu0 %v526
    %926 = vmatprep.subr.mxu0 0.0
    %927 = vmatpush2.msra.mxu0 0.0
    %928 = vmatprep.subr.mxu0 0.0
    %929 = vmatpush2.msra.mxu0 0.0
    %930 = vmatprep.subr.mxu0 0.0
    %931 = vmatpush2.msra.mxu0 0.0
    %932 = vmatprep.subr.mxu0 0.0
    %933 = vmatpush2.msra.mxu0 0.0
    %934 = vmatprep.subr.mxu0 0.0
    %935 = vmatpush2.msra.mxu0 0.0
    %936 = vmatprep.subr.mxu0 0.0
    %937 = vmatpush2.msra.mxu0 0.0
    %938 = vmatprep.subr.mxu0 0.0
    %939 = vmatpush2.msra.mxu0 0.0
    %940 = vmatprep.subr.mxu0 0.0
    %941 = vmatpush2.msra.mxu0 0.0
    %942 = vmatprep.subr.mxu0 0.0
    %943 = vmatpush2.msra.mxu0 0.0
    %944 = vmatprep.subr.mxu0 0.0
    %945 = vmatpush2.msra.mxu0 0.0
    %946 = vmatprep.subr.mxu0 0.0
    %947 = vmatpush2.msra.mxu0 0.0
    %948 = vmatprep.subr.mxu0 0.0
    %949 = vmatpush2.msra.mxu0 0.0
    %950 = vmatprep.subr.mxu0 0.0
    %951 = vmatpush2.msra.mxu0 0.0
    %952 = vmatprep.subr.mxu0 0.0
    %953 = vmatpush2.msra.mxu0 0.0
    %954 = vmatprep.subr.mxu0 0.0
    %955 = vmatpush2.msra.mxu0 0.0
    %956 = vmatprep.subr.mxu0 0.0
    %957 = vmatpush2.msra.mxu0 0.0
    %958 = vmatprep.mubr.f32.mxu0 0.0
    %959 = vmatmul.mubr.f32.gmra.mxu0 %v595
    %v960 = vpop.f32.mrf.mxu0
    %v961 = vadd.f32 %v581, %v960
    %v962 = vpop.f32.mrf.mxu0
    %v963 = vadd.f32 %v585, %v962
    %964 = vmatprep.mubr.f32.mxu0 0.0
    %965 = vmatmul.mubr.f32.gmra.mxu0 %v598
    %v966 = vpop.f32.mrf.mxu0
    %v967 = vadd.f32 %v581, %v966
    %v968 = vpop.f32.mrf.mxu0
    %v969 = vadd.f32 %v585, %v968
    %970 = vmatprep.mubr.f32.mxu0 0.0
    %971 = vmatmul.mubr.f32.gmra.mxu0 %v601
    %v972 = vpop.f32.mrf.mxu0
    %v973 = vadd.f32 %v581, %v972
    %v974 = vpop.f32.mrf.mxu0
    %v975 = vadd.f32 %v585, %v974
    %976 = vmatprep.mubr.f32.mxu0 0.0
    %977 = vmatmul.mubr.f32.gmra.mxu0 %v604
    %v978 = vpop.f32.mrf.mxu0
    %v979 = vadd.f32 %v581, %v978
    %v980 = vpop.f32.mrf.mxu0
    %v981 = vadd.f32 %v585, %v980
    %982 = vmatprep.mubr.f32.mxu0 0.0
    %983 = vmatmul.mubr.f32.gmra.mxu0 %v607
    %v984 = vpop.f32.mrf.mxu0
    %v985 = vadd.f32 %v581, %v984
    %v986 = vpop.f32.mrf.mxu0
    %v987 = vadd.f32 %v585, %v986
    %988 = vdwg.mxu0
    %989 = vst [vmem:[#allocation6] sm:$0xff] %v676
    %990 = vst [vmem:[#allocation6 + $0x8] sm:$0xff] %v678
    %991 = vst [vmem:[#allocation6 + $0x10] sm:$0xff] %v771
    %992 = vst [vmem:[#allocation6 + $0x18] sm:$0xff] %v773
    %993 = vst [vmem:[#allocation6 + $0x20] sm:$0xff] %v866
    %994 = vst [vmem:[#allocation6 + $0x28] sm:$0xff] %v868
    %995 = vst [vmem:[#allocation6 + $0x30] sm:$0xff] %v961
    %996 = vst [vmem:[#allocation6 + $0x38] sm:$0xff] %v963
    %997 = vst [vmem:[#allocation6 + $0x40] sm:$0xff] %v682
    %998 = vst [vmem:[#allocation6 + $0x48] sm:$0xff] %v684
    %999 = vst [vmem:[#allocation6 + $0x50] sm:$0xff] %v777
    %1000 = vst [vmem:[#allocation6 + $0x58] sm:$0xff] %v779
    %1001 = vst [vmem:[#allocation6 + $0x60] sm:$0xff] %v872
    %1002 = vst [vmem:[#allocation6 + $0x68] sm:$0xff] %v874
    %1003 = vst [vmem:[#allocation6 + $0x70] sm:$0xff] %v967
    %1004 = vst [vmem:[#allocation6 + $0x78] sm:$0xff] %v969
    %1005 = vst [vmem:[#allocation7] sm:$0xff] %v688
    %1006 = vst [vmem:[#allocation7 + $0x8] sm:$0xff] %v690
    %1007 = vst [vmem:[#allocation7 + $0x10] sm:$0xff] %v783
    %1008 = vst [vmem:[#allocation7 + $0x18] sm:$0xff] %v785
    %1009 = vst [vmem:[#allocation7 + $0x20] sm:$0xff] %v878
    %1010 = vst [vmem:[#allocation7 + $0x28] sm:$0xff] %v880
    %1011 = vst [vmem:[#allocation7 + $0x30] sm:$0xff] %v973
    %1012 = vst [vmem:[#allocation7 + $0x38] sm:$0xff] %v975
    %1013 = vst [vmem:[#allocation7 + $0x40] sm:$0xff] %v694
    %1014 = vst [vmem:[#allocation7 + $0x48] sm:$0xff] %v696
    %1015 = vst [vmem:[#allocation7 + $0x50] sm:$0xff] %v789
    %1016 = vst [vmem:[#allocation7 + $0x58] sm:$0xff] %v791
    %1017 = vst [vmem:[#allocation7 + $0x60] sm:$0xff] %v884
    %1018 = vst [vmem:[#allocation7 + $0x68] sm:$0xff] %v886
    %1019 = vst [vmem:[#allocation7 + $0x70] sm:$0xff] %v979
    %1020 = vst [vmem:[#allocation7 + $0x78] sm:$0xff] %v981
    %1021 = vst [vmem:[#allocation9] sm:$0xff] %v700
    %1022 = vst [vmem:[#allocation9 + $0x8] sm:$0xff] %v702
    %1023 = vst [vmem:[#allocation9 + $0x10] sm:$0xff] %v795
    %1024 = vst [vmem:[#allocation9 + $0x18] sm:$0xff] %v797
    %1025 = vst [vmem:[#allocation9 + $0x20] sm:$0xff] %v890
    %1026 = vst [vmem:[#allocation9 + $0x28] sm:$0xff] %v892
    %1027 = vst [vmem:[#allocation9 + $0x30] sm:$0xff] %v985
    %1028 = vst [vmem:[#allocation9 + $0x38] sm:$0xff] %v987
    // Predicated region
    $region46: #{sadcl_forward.1} parent=1 // pred_check
      _
    $region47: #{sadcl_forward.1} parent=1 // pred_check_branch
      %1030 = sbr.rel (0) target = $region49
    $region48: #{sadcl_forward.1} parent=1 // pred_region
      %s1032 = ssub.s32 32, 32
      %1033 = vsyncadd [#allocation3], %s1032
      %s1035 = sshll.u32 [#allocation2], 4
      %s1036 = int_to_ptr.vmem [resolvable:$true] %s1035
      %1038 = dma.vmem_to_hbm [thread:$0]  %s1036, 32, %s11, [#allocation3]
    $region49: #{sadcl_forward.1} parent=1 // pred_fallthru
      _
    // Predicated region
    $region50: #{sadcl_forward.1} parent=1 // pred_check
      _
    $region51: #{sadcl_forward.1} parent=1 // pred_check_branch
      %1040 = sbr.rel (0) target = $region53
    $region52: #{sadcl_forward.1} parent=1 // pred_region
      %s1042 = ssub.s32 256, 256
      %1043 = vsyncadd [#allocation5], %s1042
      %s1044 = sshll.u32 [#allocation4], 4
      %s1045 = int_to_ptr.vmem [resolvable:$true] %s1044
      %1050 = dma.vmem_to_hbm [thread:$0]  %s1045, 256, %s12, [#allocation5], 128, 128, 8
    $region53: #{sadcl_forward.1} parent=1 // pred_fallthru
      _
    // Predicated region
    $region54: #{sadcl_forward.1} parent=1 // pred_check
      _
    $region55: #{sadcl_forward.1} parent=1 // pred_check_branch
      %1052 = sbr.rel (0) target = $region57
    $region56: #{sadcl_forward.1} parent=1 // pred_region
      %s1054 = ssub.s32 2048, 2048
      %1055 = vsyncadd [#allocation5], %s1054
      %s1056 = sshll.u32 [#allocation6], 4
      %s1057 = int_to_ptr.vmem [resolvable:$true] %s1056
      %1062 = dma.vmem_to_hbm [thread:$0]  %s1057, 2048, %s13, [#allocation5], 1024, 1024, 64
    $region57: #{sadcl_forward.1} parent=1 // pred_fallthru
      _
    // Predicated region
    $region58: #{sadcl_forward.1} parent=1 // pred_check
      _
    $region59: #{sadcl_forward.1} parent=1 // pred_check_branch
      %1064 = sbr.rel (0) target = $region61
    $region60: #{sadcl_forward.1} parent=1 // pred_region
      %s1066 = ssub.s32 2048, 2048
      %1067 = vsyncadd [#allocation8], %s1066
      %s1068 = sshll.u32 [#allocation7], 4
      %s1069 = int_to_ptr.vmem [resolvable:$true] %s1068
      %1074 = dma.vmem_to_hbm [thread:$0]  %s1069, 2048, %s14, [#allocation8], 1024, 1024, 64
    $region61: #{sadcl_forward.1} parent=1 // pred_fallthru
      _
    // Predicated region
    $region62: #{sadcl_forward.1} parent=1 // pred_check
      _
    $region63: #{sadcl_forward.1} parent=1 // pred_check_branch
      %1076 = sbr.rel (0) target = $region65
    $region64: #{sadcl_forward.1} parent=1 // pred_region
      %s1078 = ssub.s32 1024, 1024
      %1079 = vsyncadd [#allocation8], %s1078
      %s1081 = sshll.u32 [#allocation9], 4
      %s1082 = int_to_ptr.vmem [resolvable:$true] %s1081
      %1084 = dma.vmem_to_hbm [thread:$0]  %s1082, 1024, %s15, [#allocation8]
    $region65: #{sadcl_forward.1} parent=1 // pred_fallthru
      _
    // Predicated region
    $region66: #{sadcl_forward.1} parent=1 // pred_check
      _
    $region67: #{sadcl_forward.1} parent=1 // pred_check_branch
      %1086 = sbr.rel (0) target = $region69
    $region68: #{sadcl_forward.1} parent=1 // pred_region
      %1087 = dma.done [#allocation3], 32
    $region69: #{sadcl_forward.1} parent=1 // pred_fallthru
      _
    // Predicated region
    $region70: #{sadcl_forward.1} parent=1 // pred_check
      _
    $region71: #{sadcl_forward.1} parent=1 // pred_check_branch
      %1089 = sbr.rel (0) target = $region73
    $region72: #{sadcl_forward.1} parent=1 // pred_region
      %1090 = dma.done [#allocation5], 256
    $region73: #{sadcl_forward.1} parent=1 // pred_fallthru
      _
    // Predicated region
    $region74: #{sadcl_forward.1} parent=1 // pred_check
      _
    $region75: #{sadcl_forward.1} parent=1 // pred_check_branch
      %1092 = sbr.rel (0) target = $region77
    $region76: #{sadcl_forward.1} parent=1 // pred_region
      %1093 = dma.done [#allocation5], 2048
    $region77: #{sadcl_forward.1} parent=1 // pred_fallthru
      _
    // Predicated region
    $region78: #{sadcl_forward.1} parent=1 // pred_check
      _
    $region79: #{sadcl_forward.1} parent=1 // pred_check_branch
      %1095 = sbr.rel (0) target = $region81
    $region80: #{sadcl_forward.1} parent=1 // pred_region
      %1096 = dma.done [#allocation8], 2048
    $region81: #{sadcl_forward.1} parent=1 // pred_fallthru
      _
    // Predicated region
    $region82: #{sadcl_forward.1} parent=1 // pred_check
      _
    $region83: #{sadcl_forward.1} parent=1 // pred_check_branch
      %1098 = sbr.rel (0) target = $region85
    $region84: #{sadcl_forward.1} parent=1 // pred_region
      %1099 = dma.done [#allocation8], 1024
    $region85: #{sadcl_forward.1} parent=1 // pred_fallthru
      _
    %1100 = vsyncpa [#allocation3], 1
    %1101 = vsyncpa [#allocation5], 1
    %1102 = vsyncpa [#allocation8], 1

</llo_original>
